<compile_context>
chip_gen: v6e
topology: v6e:2x2x1
jax: 0.10.0
libtpu: 0.0.40
codegen_flags: <defaults>
</compile_context>

<pallas_src>
import functools

import jax
import jax.numpy as jnp
from jax.experimental import pallas as pl
from jax.experimental.pallas import tpu as pltpu

EPS = 1e-5
QPAD = 8   # q row padded to a full sublane tile so the k/v slices stay 8-aligned


def _ltb_kernel(x_ref, w_ref, wfc2_ref, b_ref, o_ref, *, patch_area, num_patches):
    P, N = patch_area, num_patches
    C, PN = x_ref.shape
    H = wfc2_ref.shape[1]
    r0 = QPAD + 2 * C          # end of fused qkv rows in the packed weight/bias
    r1 = r0 + C                # end of w_out rows
    r2 = r1 + H                # end of w_fc1 rows
    inv_n = 1.0 / (C * PN)

    # Constant 0/1 group-membership matrix M[p, t] = (t in patch-position p),
    # built once from iotas (token t = p*N + n in the flattened lane dim).
    lane = jax.lax.broadcasted_iota(jnp.int32, (P, PN), 1)
    row = jax.lax.broadcasted_iota(jnp.int32, (P, PN), 0)
    lo = row * N
    mask_f = ((lane >= lo) & (lane < lo + N)).astype(jnp.float32)   # (P, PN)

    x = x_ref[...]                                        # (C, PN) lane-dense f32

    # ---- norm1: GroupNorm(num_groups=1); sum & sum-of-squares in ONE pass ----
    stats = jnp.sum(jnp.concatenate([x, x * x], axis=0), axis=1, keepdims=True)
    mu = jnp.sum(stats[0:C], keepdims=True) * inv_n                 # (1, 1)
    msq = jnp.sum(stats[C:2 * C], keepdims=True) * inv_n            # (1, 1)
    var = jnp.maximum(msq - mu * mu, 0.0)                           # clamp >= 0
    xn = (x - mu) * jax.lax.rsqrt(var + EPS)    # affine folded into w_qkv/b_qkv

    # ---- fused q/k/v: one sublane-padded (QPAD+2C, C) @ (C, PN) MXU matmul ----
    qkv = jnp.dot(w_ref[0:r0, :], xn,
                  preferred_element_type=jnp.float32) + b_ref[0:r0, :]
    q = qkv[0:1, :]                                       # (1, PN)
    k = qkv[QPAD:QPAD + C, :]                             # (C, PN), 8-aligned
    v = qkv[QPAD + C:r0, :]                               # (C, PN), 8-aligned

    # ---- LinearSelfAttention: segment softmax + context as MXU matmuls ----
    # A single global max is shift-invariant within every group -> one exp pass.
    e = jnp.exp(q - jnp.max(q, keepdims=True))            # (1, PN)
    eg = mask_f * e                                       # (P, PN), disjoint rows
    ssum = jnp.sum(eg, axis=1, keepdims=True)             # (P, 1) partition sums
    inv = pl.reciprocal(ssum, approx=True)                # EUP slot
    inv = inv * (2.0 - ssum * inv)                        # Newton step -> f32 accuracy
    s = eg * inv                                          # (P, PN) softmax weights
    # ctx(C, P) = k @ s^T   (contract over the PN token axis, on the MXU)
    ctx = jax.lax.dot_general(k, s, (((1,), (1,)), ((), ())),
                              preferred_element_type=jnp.float32)
    # scatter back to every token of its group: (C, P) @ (P, PN) on the MXU
    ctx_full = jnp.dot(ctx, mask_f, preferred_element_type=jnp.float32)
    att = jnp.maximum(v, 0.0) * ctx_full                  # relu(value) * context
    att = jnp.dot(w_ref[r0:r1, :], att,
                  preferred_element_type=jnp.float32) + b_ref[r0:r1, :]
    x1 = x + att                                          # residual (drop_path = id)

    # ---- norm2: GroupNorm(1); fused single-pass stats ----
    stats2 = jnp.sum(jnp.concatenate([x1, x1 * x1], axis=0), axis=1, keepdims=True)
    mu2 = jnp.sum(stats2[0:C], keepdims=True) * inv_n
    msq2 = jnp.sum(stats2[C:2 * C], keepdims=True) * inv_n
    var2 = jnp.maximum(msq2 - mu2 * mu2, 0.0)
    x2 = (x1 - mu2) * jax.lax.rsqrt(var2 + EPS)   # affine folded into w_fc1/b_fc1

    # ---- ConvMlp: 1x1 conv -> SiLU -> 1x1 conv (dropout = identity) ----
    h = jnp.dot(w_ref[r1:r2, :], x2,
                preferred_element_type=jnp.float32) + b_ref[r1:r2, :]
    h = h * jax.nn.sigmoid(h)                             # SiLU (EUP)
    m = jnp.dot(wfc2_ref[...], h,
                preferred_element_type=jnp.float32) + b_ref[r2:r2 + C, :]
    o_ref[...] = x1 + m                                   # lane-dense store


def linear_transformer_block(x_nchw, params):
    """x_nchw: (B, C, P, N) float32. Returns same shape."""
    B, C, P, N = x_nchw.shape
    PN = P * N
    x = x_nchw.reshape(B, C, PN)           # free: collapses contiguous minor dims

    g1 = params["g1"][0]; b1n = params["b1"][0]
    g2 = params["g2"][0]; b2n = params["b2"][0]
    wqkv = params["wqkv"]; bqkv = params["bqkv"][0]
    wout = params["wout"]; bout = params["bout"][0]
    wfc1 = params["wfc1"]; bfc1 = params["bfc1"][0]
    wfc2 = params["wfc2"]; bfc2 = params["bfc2"][0]
    H = wfc1.shape[0]

    # Fold each GroupNorm affine into the matmul that consumes it.
    wqkv_f = wqkv * g1[None, :]
    bqkv_f = bqkv + wqkv @ b1n
    wfc1_f = wfc1 * g2[None, :]
    bfc1_f = bfc1 + wfc1 @ b2n

    # Re-fused, sublane-padded qkv weight: q at row 0, rows 1..QPAD-1 zero,
    # k at rows QPAD..QPAD+C, v at rows QPAD+C..QPAD+2C.
    w_qkv_pad = jnp.zeros((QPAD + 2 * C, C), jnp.float32)
    w_qkv_pad = w_qkv_pad.at[0:1].set(wqkv_f[0:1]).at[QPAD:].set(wqkv_f[1:])
    b_qkv_pad = jnp.zeros((QPAD + 2 * C,), jnp.float32)
    b_qkv_pad = b_qkv_pad.at[0].set(bqkv_f[0]).at[QPAD:].set(bqkv_f[1:])

    # Pack operands: all C-column weights in one array, all biases in one
    # column vector, fc2 on its own -> 4 refs / DMAs instead of 13.
    w_stack = jnp.concatenate([w_qkv_pad, wout, wfc1_f], axis=0)   # (QPAD+3C+H, C)
    b_stack = jnp.concatenate([b_qkv_pad, bout, bfc1_f, bfc2], axis=0)[:, None]

    r0 = QPAD + 2 * C
    flops = 2 * B * PN * C * (r0 + 2 * P + C + 2 * H)
    transcendentals = B * (PN * (1 + H) + 2 * P + 8)
    bytes_accessed = 4 * (2 * B * C * PN
                          + int(w_stack.size) + int(wfc2.size) + int(b_stack.size))

    out = pl.pallas_call(
        functools.partial(_ltb_kernel, patch_area=P, num_patches=N),
        out_shape=jax.ShapeDtypeStruct((B, C, PN), jnp.float32),
        grid=(B,),
        in_specs=[
            pl.BlockSpec((None, C, PN), lambda b: (b, 0, 0)),   # per-sample block
            pl.BlockSpec(w_stack.shape, lambda b: (0, 0)),      # resident weights
            pl.BlockSpec(wfc2.shape, lambda b: (0, 0)),
            pl.BlockSpec(b_stack.shape, lambda b: (0, 0)),
        ],
        out_specs=pl.BlockSpec((None, C, PN), lambda b: (b, 0, 0)),
        compiler_params=pltpu.CompilerParams(dimension_semantics=("parallel",)),
        cost_estimate=pl.CostEstimate(flops=int(flops),
                                      transcendentals=int(transcendentals),
                                      bytes_accessed=int(bytes_accessed)),
    )(x, w_stack, wfc2, b_stack)

    return out.reshape(B, C, P, N)         # free reshape back to NCHW


def reference(x, p, C):
    """Pure-JAX NCHW reference mirroring the PyTorch module."""
    def gn(y, g, b):
        mu = y.mean(axis=(1, 2, 3), keepdims=True)
        var = ((y - mu) ** 2).mean(axis=(1, 2, 3), keepdims=True)
        return (y - mu) / jnp.sqrt(var + EPS) * g[None, :, None, None] + b[None, :, None, None]

    def conv1x1(y, w, b):
        return jnp.einsum('bcpn,oc->bopn', y, w) + b[None, :, None, None]

    xn = gn(x, p["g1"][0], p["b1"][0])
    qkv = conv1x1(xn, p["wqkv"], p["bqkv"][0])
    q, k, v = qkv[:, :1], qkv[:, 1:1 + C], qkv[:, 1 + C:]
    scores = jax.nn.softmax(q, axis=-1)
    ctx = (k * scores).sum(axis=-1, keepdims=True)
    att = jax.nn.relu(v) * ctx
    att = conv1x1(att, p["wout"], p["bout"][0])
    x1 = x + att
    x2 = gn(x1, p["g2"][0], p["b2"][0])
    h = conv1x1(x2, p["wfc1"], p["bfc1"][0])
    h = h * jax.nn.sigmoid(h)
    m = conv1x1(h, p["wfc2"], p["bfc2"][0])
    return x1 + m


if __name__ == "__main__":
    B, C, P, N = 2, 32, 4, 64          # batch, embed_dim, patch_area, num_patches
    H = int(C * 2.0)                   # mlp hidden

    key = jax.random.PRNGKey(0)
    ks = jax.random.split(key, 12)

    # deterministic synthetic params (PyTorch conv weight shape is (out, in, 1, 1),
    # kept here as (out, in); the kernel consumes them directly as W @ X matmuls)
    wqkv = jax.random.normal(ks[0], (1 + 2 * C, C), jnp.float32) * 0.05
    bqkv = jax.random.normal(ks[1], (1, 1 + 2 * C), jnp.float32) * 0.05
    wout = jax.random.normal(ks[2], (C, C), jnp.float32) * 0.05
    bout = jax.random.normal(ks[3], (1, C), jnp.float32) * 0.05
    wfc1 = jax.random.normal(ks[4], (H, C), jnp.float32) * 0.05
    bfc1 = jax.random.normal(ks[5], (1, H), jnp.float32) * 0.05
    wfc2 = jax.random.normal(ks[6], (C, H), jnp.float32) * 0.05
    bfc2 = jax.random.normal(ks[7], (1, C), jnp.float32) * 0.05
    g1 = 1.0 + 0.1 * jax.random.normal(ks[8], (1, C), jnp.float32)
    b1 = 0.1 * jax.random.normal(ks[9], (1, C), jnp.float32)
    g2 = 1.0 + 0.1 * jax.random.normal(ks[10], (1, C), jnp.float32)
    b2 = 0.1 * jax.random.normal(ks[11], (1, C), jnp.float32)

    params = dict(
        g1=g1, b1=b1, g2=g2, b2=b2,
        wqkv=wqkv, bqkv=bqkv, wout=wout, bout=bout,
        wfc1=wfc1, bfc1=bfc1, wfc2=wfc2, bfc2=bfc2,
    )

    x = jax.random.normal(jax.random.PRNGKey(42), (B, C, P, N), jnp.float32)

    out = jax.block_until_ready(linear_transformer_block(x, params))

    ref = reference(x, params, C)
    assert out.shape == (B, C, P, N)
    assert jnp.allclose(out, ref, rtol=1e-4, atol=1e-4), \
        f"max err {jnp.max(jnp.abs(out - ref))}"

    print("KERNEL_OK")
</pallas_src>

<mosaic_0001>
module attributes {stable_mosaic.version = 11 : i64} {
  func.func @_ltb_kernel(%arg0: i32, %arg1: memref<1x32x256xf32, #tpu.memory_space<vmem>>, %arg2: memref<168x32xf32, #tpu.memory_space<vmem>>, %arg3: memref<32x64xf32, #tpu.memory_space<vmem>>, %arg4: memref<200x1xf32, #tpu.memory_space<vmem>>, %arg5: memref<1x32x256xf32, #tpu.memory_space<vmem>>) attributes {dimension_semantics = [#tpu.dimension_semantics<parallel>], iteration_bounds = array<i64: 2>, scalar_prefetch = 0 : i64, scratch_operands = 0 : i64, tpu.core_type = #tpu.core_type<tc>, window_params = [{transform_indices = @transform_0, window_bounds = array<i64: 1, 32, 256>}, {pipeline_mode = #tpu.pipeline_mode<synchronous>, transform_indices = @transform_1, window_bounds = array<i64: 168, 32>}, {pipeline_mode = #tpu.pipeline_mode<synchronous>, transform_indices = @transform_2, window_bounds = array<i64: 32, 64>}, {pipeline_mode = #tpu.pipeline_mode<synchronous>, transform_indices = @transform_3, window_bounds = array<i64: 200, 1>}, {transform_indices = @transform_4, window_bounds = array<i64: 1, 32, 256>}]} {
    %0 = tpu.iota {dimensions = array<i32: 1>} : vector<4x256xi32>
    %1 = tpu.iota {dimensions = array<i32: 0>} : vector<4x256xi32>
    %c64_i32 = arith.constant 64 : i32
    %2 = vector.broadcast %c64_i32 : i32 to vector<4x256xi32>
    %3 = arith.muli %1, %2 : vector<4x256xi32>
    %4 = arith.cmpi sge, %0, %3 : vector<4x256xi32>
    %c64_i32_0 = arith.constant 64 : i32
    %5 = vector.broadcast %c64_i32_0 : i32 to vector<4x256xi32>
    %6 = arith.addi %3, %5 : vector<4x256xi32>
    %7 = arith.cmpi slt, %0, %6 : vector<4x256xi32>
    %8 = arith.andi %4, %7 : vector<4x256xi1>
    %9 = arith.extui %8 : vector<4x256xi1> to vector<4x256xi32>
    %10 = arith.sitofp %9 : vector<4x256xi32> to vector<4x256xf32>
    %c0 = arith.constant 0 : index
    %c0_1 = arith.constant 0 : index
    %c0_2 = arith.constant 0 : index
    %11 = vector.load %arg1[%c0, %c0_1, %c0_2] : memref<1x32x256xf32, #tpu.memory_space<vmem>>, vector<1x32x256xf32>
    %12 = vector.shape_cast %11 : vector<1x32x256xf32> to vector<32x256xf32>
    %13 = arith.mulf %12, %12 : vector<32x256xf32>
    %14 = tpu.concatenate %12, %13 in 0 : vector<32x256xf32>, vector<32x256xf32> -> vector<64x256xf32>
    %cst = arith.constant dense<0.000000e+00> : vector<64xf32>
    %15 = vector.multi_reduction <add>, %14, %cst [1] : vector<64x256xf32> to vector<64xf32>
    %16 = vector.shape_cast %15 : vector<64xf32> to vector<64x1xf32>
    %17 = vector.extract_strided_slice %16 {offsets = [0, 0], sizes = [32, 1], strides = [1, 1]} : vector<64x1xf32> to vector<32x1xf32>
    %18 = vector.shape_cast %17 : vector<32x1xf32> to vector<1x32x1xf32>
    %cst_3 = arith.constant dense<0.000000e+00> : vector<1xf32>
    %19 = vector.multi_reduction <add>, %18, %cst_3 [1, 2] : vector<1x32x1xf32> to vector<1xf32>
    %20 = vector.shape_cast %19 : vector<1xf32> to vector<1x1x1xf32>
    %21 = vector.extract %20[0, 0, 0] : f32 from vector<1x1x1xf32>
    %22 = vector.broadcast %21 : f32 to vector<1x1xf32>
    %cst_4 = arith.constant 1.22070313E-4 : f32
    %23 = vector.broadcast %cst_4 : f32 to vector<1x1xf32>
    %24 = arith.mulf %22, %23 : vector<1x1xf32>
    %25 = vector.extract_strided_slice %16 {offsets = [32, 0], sizes = [32, 1], strides = [1, 1]} : vector<64x1xf32> to vector<32x1xf32>
    %26 = vector.shape_cast %25 : vector<32x1xf32> to vector<1x32x1xf32>
    %cst_5 = arith.constant dense<0.000000e+00> : vector<1xf32>
    %27 = vector.multi_reduction <add>, %26, %cst_5 [1, 2] : vector<1x32x1xf32> to vector<1xf32>
    %28 = vector.shape_cast %27 : vector<1xf32> to vector<1x1x1xf32>
    %29 = vector.extract %28[0, 0, 0] : f32 from vector<1x1x1xf32>
    %30 = vector.broadcast %29 : f32 to vector<1x1xf32>
    %cst_6 = arith.constant 1.22070313E-4 : f32
    %31 = vector.broadcast %cst_6 : f32 to vector<1x1xf32>
    %32 = arith.mulf %30, %31 : vector<1x1xf32>
    %33 = arith.mulf %24, %24 : vector<1x1xf32>
    %34 = arith.subf %32, %33 : vector<1x1xf32>
    %cst_7 = arith.constant 0.000000e+00 : f32
    %35 = vector.broadcast %cst_7 : f32 to vector<1x1xf32>
    %36 = arith.maximumf %34, %35 : vector<1x1xf32>
    %37 = vector.broadcast %24 : vector<1x1xf32> to vector<32x256xf32>
    %38 = arith.subf %12, %37 : vector<32x256xf32>
    %cst_8 = arith.constant 9.99999974E-6 : f32
    %39 = vector.broadcast %cst_8 : f32 to vector<1x1xf32>
    %40 = arith.addf %36, %39 : vector<1x1xf32>
    %41 = math.rsqrt %40 : vector<1x1xf32>
    %42 = vector.broadcast %41 : vector<1x1xf32> to vector<32x256xf32>
    %43 = arith.mulf %38, %42 : vector<32x256xf32>
    %c0_9 = arith.constant 0 : index
    %c0_10 = arith.constant 0 : index
    %44 = vector.load %arg2[%c0_9, %c0_10] : memref<168x32xf32, #tpu.memory_space<vmem>>, vector<72x32xf32>
    %cst_11 = arith.constant dense<0.000000e+00> : vector<72x256xf32>
    %45 = tpu.matmul %44, %43, %cst_11 {dimension_numbers = #tpu.dot_dimension_numbers<[1], [0], [0], [1], [0, 0, 1, 1], [], []>} : vector<72x32xf32>, vector<32x256xf32>, vector<72x256xf32> -> vector<72x256xf32>
    %c0_12 = arith.constant 0 : index
    %c0_13 = arith.constant 0 : index
    %46 = vector.load %arg4[%c0_12, %c0_13] : memref<200x1xf32, #tpu.memory_space<vmem>>, vector<72x1xf32>
    %47 = vector.broadcast %46 : vector<72x1xf32> to vector<72x256xf32>
    %48 = arith.addf %45, %47 : vector<72x256xf32>
    %49 = vector.extract_strided_slice %48 {offsets = [0, 0], sizes = [1, 256], strides = [1, 1]} : vector<72x256xf32> to vector<1x256xf32>
    %50 = vector.extract_strided_slice %48 {offsets = [8, 0], sizes = [32, 256], strides = [1, 1]} : vector<72x256xf32> to vector<32x256xf32>
    %51 = vector.extract_strided_slice %48 {offsets = [40, 0], sizes = [32, 256], strides = [1, 1]} : vector<72x256xf32> to vector<32x256xf32>
    %52 = vector.shape_cast %49 : vector<1x256xf32> to vector<1x1x256xf32>
    %cst_14 = arith.constant dense<0xFF800000> : vector<1xf32>
    %53 = vector.multi_reduction <maximumf>, %52, %cst_14 [1, 2] : vector<1x1x256xf32> to vector<1xf32>
    %54 = vector.shape_cast %53 : vector<1xf32> to vector<1x1x1xf32>
    %55 = vector.extract %54[0, 0, 0] : f32 from vector<1x1x1xf32>
    %56 = vector.broadcast %55 : f32 to vector<1x1xf32>
    %57 = vector.broadcast %56 : vector<1x1xf32> to vector<1x256xf32>
    %58 = arith.subf %49, %57 : vector<1x256xf32>
    %59 = math.exp %58 : vector<1x256xf32>
    %60 = vector.broadcast %59 : vector<1x256xf32> to vector<4x256xf32>
    %61 = arith.mulf %10, %60 : vector<4x256xf32>
    %cst_15 = arith.constant dense<0.000000e+00> : vector<4xf32>
    %62 = vector.multi_reduction <add>, %61, %cst_15 [1] : vector<4x256xf32> to vector<4xf32>
    %63 = vector.shape_cast %62 : vector<4xf32> to vector<4x1xf32>
    %64 = tpu.reciprocal %63 {approx = true} : vector<4x1xf32> -> vector<4x1xf32>
    %65 = arith.mulf %63, %64 : vector<4x1xf32>
    %cst_16 = arith.constant 2.000000e+00 : f32
    %66 = vector.broadcast %cst_16 : f32 to vector<4x1xf32>
    %67 = arith.subf %66, %65 : vector<4x1xf32>
    %68 = arith.mulf %64, %67 : vector<4x1xf32>
    %69 = vector.broadcast %68 : vector<4x1xf32> to vector<4x256xf32>
    %70 = arith.mulf %61, %69 : vector<4x256xf32>
    %cst_17 = arith.constant dense<0.000000e+00> : vector<32x4xf32>
    %71 = tpu.matmul %50, %70, %cst_17 {dimension_numbers = #tpu.dot_dimension_numbers<[1], [1], [0], [0], [0, 0, 1, 0], [], []>} : vector<32x256xf32>, vector<4x256xf32>, vector<32x4xf32> -> vector<32x4xf32>
    %cst_18 = arith.constant dense<0.000000e+00> : vector<32x256xf32>
    %72 = tpu.matmul %71, %10, %cst_18 {dimension_numbers = #tpu.dot_dimension_numbers<[1], [0], [0], [1], [0, 0, 1, 1], [], []>} : vector<32x4xf32>, vector<4x256xf32>, vector<32x256xf32> -> vector<32x256xf32>
    %cst_19 = arith.constant 0.000000e+00 : f32
    %73 = vector.broadcast %cst_19 : f32 to vector<32x256xf32>
    %74 = arith.maximumf %51, %73 : vector<32x256xf32>
    %75 = arith.mulf %74, %72 : vector<32x256xf32>
    %c72 = arith.constant 72 : index
    %c0_20 = arith.constant 0 : index
    %76 = vector.load %arg2[%c72, %c0_20] : memref<168x32xf32, #tpu.memory_space<vmem>>, vector<32x32xf32>
    %cst_21 = arith.constant dense<0.000000e+00> : vector<32x256xf32>
    %77 = tpu.matmul %76, %75, %cst_21 {dimension_numbers = #tpu.dot_dimension_numbers<[1], [0], [0], [1], [0, 0, 1, 1], [], []>} : vector<32x32xf32>, vector<32x256xf32>, vector<32x256xf32> -> vector<32x256xf32>
    %c72_22 = arith.constant 72 : index
    %c0_23 = arith.constant 0 : index
    %78 = vector.load %arg4[%c72_22, %c0_23] : memref<200x1xf32, #tpu.memory_space<vmem>>, vector<32x1xf32>
    %79 = vector.broadcast %78 : vector<32x1xf32> to vector<32x256xf32>
    %80 = arith.addf %77, %79 : vector<32x256xf32>
    %81 = arith.addf %12, %80 : vector<32x256xf32>
    %82 = arith.mulf %81, %81 : vector<32x256xf32>
    %83 = tpu.concatenate %81, %82 in 0 : vector<32x256xf32>, vector<32x256xf32> -> vector<64x256xf32>
    %cst_24 = arith.constant dense<0.000000e+00> : vector<64xf32>
    %84 = vector.multi_reduction <add>, %83, %cst_24 [1] : vector<64x256xf32> to vector<64xf32>
    %85 = vector.shape_cast %84 : vector<64xf32> to vector<64x1xf32>
    %86 = vector.extract_strided_slice %85 {offsets = [0, 0], sizes = [32, 1], strides = [1, 1]} : vector<64x1xf32> to vector<32x1xf32>
    %87 = vector.shape_cast %86 : vector<32x1xf32> to vector<1x32x1xf32>
    %cst_25 = arith.constant dense<0.000000e+00> : vector<1xf32>
    %88 = vector.multi_reduction <add>, %87, %cst_25 [1, 2] : vector<1x32x1xf32> to vector<1xf32>
    %89 = vector.shape_cast %88 : vector<1xf32> to vector<1x1x1xf32>
    %90 = vector.extract %89[0, 0, 0] : f32 from vector<1x1x1xf32>
    %91 = vector.broadcast %90 : f32 to vector<1x1xf32>
    %cst_26 = arith.constant 1.22070313E-4 : f32
    %92 = vector.broadcast %cst_26 : f32 to vector<1x1xf32>
    %93 = arith.mulf %91, %92 : vector<1x1xf32>
    %94 = vector.extract_strided_slice %85 {offsets = [32, 0], sizes = [32, 1], strides = [1, 1]} : vector<64x1xf32> to vector<32x1xf32>
    %95 = vector.shape_cast %94 : vector<32x1xf32> to vector<1x32x1xf32>
    %cst_27 = arith.constant dense<0.000000e+00> : vector<1xf32>
    %96 = vector.multi_reduction <add>, %95, %cst_27 [1, 2] : vector<1x32x1xf32> to vector<1xf32>
    %97 = vector.shape_cast %96 : vector<1xf32> to vector<1x1x1xf32>
    %98 = vector.extract %97[0, 0, 0] : f32 from vector<1x1x1xf32>
    %99 = vector.broadcast %98 : f32 to vector<1x1xf32>
    %cst_28 = arith.constant 1.22070313E-4 : f32
    %100 = vector.broadcast %cst_28 : f32 to vector<1x1xf32>
    %101 = arith.mulf %99, %100 : vector<1x1xf32>
    %102 = arith.mulf %93, %93 : vector<1x1xf32>
    %103 = arith.subf %101, %102 : vector<1x1xf32>
    %cst_29 = arith.constant 0.000000e+00 : f32
    %104 = vector.broadcast %cst_29 : f32 to vector<1x1xf32>
    %105 = arith.maximumf %103, %104 : vector<1x1xf32>
    %106 = vector.broadcast %93 : vector<1x1xf32> to vector<32x256xf32>
    %107 = arith.subf %81, %106 : vector<32x256xf32>
    %cst_30 = arith.constant 9.99999974E-6 : f32
    %108 = vector.broadcast %cst_30 : f32 to vector<1x1xf32>
    %109 = arith.addf %105, %108 : vector<1x1xf32>
    %110 = math.rsqrt %109 : vector<1x1xf32>
    %111 = vector.broadcast %110 : vector<1x1xf32> to vector<32x256xf32>
    %112 = arith.mulf %107, %111 : vector<32x256xf32>
    %c104 = arith.constant 104 : index
    %c0_31 = arith.constant 0 : index
    %113 = vector.load %arg2[%c104, %c0_31] : memref<168x32xf32, #tpu.memory_space<vmem>>, vector<64x32xf32>
    %cst_32 = arith.constant dense<0.000000e+00> : vector<64x256xf32>
    %114 = tpu.matmul %113, %112, %cst_32 {dimension_numbers = #tpu.dot_dimension_numbers<[1], [0], [0], [1], [0, 0, 1, 1], [], []>} : vector<64x32xf32>, vector<32x256xf32>, vector<64x256xf32> -> vector<64x256xf32>
    %c104_33 = arith.constant 104 : index
    %c0_34 = arith.constant 0 : index
    %115 = vector.load %arg4[%c104_33, %c0_34] : memref<200x1xf32, #tpu.memory_space<vmem>>, vector<64x1xf32>
    %116 = vector.broadcast %115 : vector<64x1xf32> to vector<64x256xf32>
    %117 = arith.addf %114, %116 : vector<64x256xf32>
    %118 = arith.negf %117 : vector<64x256xf32>
    %119 = math.exp %118 : vector<64x256xf32>
    %cst_35 = arith.constant 1.000000e+00 : f32
    %120 = vector.broadcast %cst_35 : f32 to vector<64x256xf32>
    %121 = arith.addf %120, %119 : vector<64x256xf32>
    %122 = arith.divf %120, %121 : vector<64x256xf32>
    %123 = arith.mulf %117, %122 : vector<64x256xf32>
    %c0_36 = arith.constant 0 : index
    %c0_37 = arith.constant 0 : index
    %124 = vector.load %arg3[%c0_36, %c0_37] : memref<32x64xf32, #tpu.memory_space<vmem>>, vector<32x64xf32>
    %cst_38 = arith.constant dense<0.000000e+00> : vector<32x256xf32>
    %125 = tpu.matmul %124, %123, %cst_38 {dimension_numbers = #tpu.dot_dimension_numbers<[1], [0], [0], [1], [0, 0, 1, 1], [], []>} : vector<32x64xf32>, vector<64x256xf32>, vector<32x256xf32> -> vector<32x256xf32>
    %c168 = arith.constant 168 : index
    %c0_39 = arith.constant 0 : index
    %126 = vector.load %arg4[%c168, %c0_39] : memref<200x1xf32, #tpu.memory_space<vmem>>, vector<32x1xf32>
    %127 = vector.broadcast %126 : vector<32x1xf32> to vector<32x256xf32>
    %128 = arith.addf %125, %127 : vector<32x256xf32>
    %129 = arith.addf %81, %128 : vector<32x256xf32>
    %c0_40 = arith.constant 0 : index
    %c0_41 = arith.constant 0 : index
    %c0_42 = arith.constant 0 : index
    %130 = vector.load %arg5[%c0_40, %c0_41, %c0_42] : memref<1x32x256xf32, #tpu.memory_space<vmem>>, vector<1x32x256xf32>
    %131 = vector.shape_cast %130 : vector<1x32x256xf32> to vector<32x256xf32>
    %132 = vector.shape_cast %129 : vector<32x256xf32> to vector<1x32x256xf32>
    tpu.vector_store %arg5[%c0_40, %c0_41, %c0_42], %132 {strides = array<i32>} : memref<1x32x256xf32, #tpu.memory_space<vmem>>, vector<1x32x256xf32>,
    return
  }
  func.func @transform_0(%arg0: i32) -> (i32, i32, i32) {
    %c0_i32 = arith.constant 0 : i32
    %c0_i32_0 = arith.constant 0 : i32
    %c0_i32_1 = arith.constant 0 : i32
    return %arg0, %c0_i32, %c0_i32_0 : i32, i32, i32
  }
  func.func @transform_1(%arg0: i32) -> (i32, i32) {
    %c0_i32 = arith.constant 0 : i32
    %c0_i32_0 = arith.constant 0 : i32
    %c0_i32_1 = arith.constant 0 : i32
    return %c0_i32, %c0_i32_0 : i32, i32
  }
  func.func @transform_2(%arg0: i32) -> (i32, i32) {
    %c0_i32 = arith.constant 0 : i32
    %c0_i32_0 = arith.constant 0 : i32
    %c0_i32_1 = arith.constant 0 : i32
    return %c0_i32, %c0_i32_0 : i32, i32
  }
  func.func @transform_3(%arg0: i32) -> (i32, i32) {
    %c0_i32 = arith.constant 0 : i32
    %c0_i32_0 = arith.constant 0 : i32
    %c0_i32_1 = arith.constant 0 : i32
    return %c0_i32, %c0_i32_0 : i32, i32
  }
  func.func @transform_4(%arg0: i32) -> (i32, i32, i32) {
    %c0_i32 = arith.constant 0 : i32
    %c0_i32_0 = arith.constant 0 : i32
    %c0_i32_1 = arith.constant 0 : i32
    return %arg0, %c0_i32, %c0_i32_0 : i32, i32, i32
  }
}

</mosaic_0001>

<llo_original>
// kernel: tpu_custom_call.1
$region0: #{tpu_custom_call.1}
  #allocation0 [shape = 'u32[]', space=smem, size = 0x4, offset = 0x4, fixed_abs, tag = 'smem constant byte address 0x4 - core index']
  #allocation1 [shape = 'u32[144,128]{1,0:T(1,128)}', space=vmem, size = 0x12000, scoped, tag = 'internal scratch']
  %s0 = inlined_call_operand.vmem [shape: f32[2,32,256], index: 0, kind: input, shape index: {}]
  %s1 = inlined_call_operand.vmem [shape: f32[168,32], index: 1, kind: input, shape index: {}]
  %s2 = inlined_call_operand.vmem [shape: f32[32,64], index: 2, kind: input, shape index: {}]
  %s3 = inlined_call_operand.vmem [shape: f32[200,1], index: 3, kind: input, shape index: {}]
  %s4 = inlined_call_operand.hbm [shape: f32[2,32,256], index: 4, kind: output, shape index: {}]
  %s5 = sld [smem:[#allocation0]]
  $region49: #{tpu_custom_call.1} parent=0
    _
  %s7 = ssub.s32 1, %s5
  %s8 = scalar_select 0, %s7, %s5
  $region1: #{tpu_custom_call.1} parent=0
    #allocation2 [shape = 'u8[65536]{0}', space=vmem, size = 0x10000, scoped, tag = 'output window, operand 0']
    #allocation3 [shape = 's32[2]{0}', space=sflag, size = 0x8, scoped, tag = 'scoped memory for tpu_custom_call.1']
    %9 = vsyncpa [#allocation3], 0
    %s10 = scalar_lea.sflag [#allocation3], 1
    %11 = vsyncpa %s10, 0
    loop: start=0, step=1, limit=4
    $region2: #{tpu_custom_call.1} parent=1 // loop_pre_header
      _
    $region3: #{tpu_custom_call.1} parent=1 // loop_header
      %s13 = sphi 0, %s17
      %p14 = scmp.ge.s32.totalorder %s13, 4
      %s23 = sphi 0, %s25
      %s26 = sphi 0, %s23
      %s27 = sphi 0, %s26
      %s43 = sphi 0, %s27
      %s47 = sphi 0, %s47
      %s49 = sphi 0, %s47
      %s50 = sphi 0, %s49
      %s64 = sphi 0, %s50
      %s68 = sphi 0, %s68
      %s70 = sphi 0, %s68
      %s71 = sphi 0, %s70
      %s85 = sphi 0, %s71
      %s89 = sphi 0, %s89
      %s91 = sphi 0, %s89
      %s92 = sphi 0, %s91
      %s106 = sphi 0, %s92
      %s112 = sphi 0, %s114
      %s115 = sphi 0, %s112
      %s116 = sphi 0, %s115
      %s132 = sphi 0, %s116
    $region4: #{tpu_custom_call.1} parent=1 // loop_header_branch
      %16 = sbr.rel (%p14) target = $region8
    $region5: #{tpu_custom_call.1} parent=1 // loop_body
      %s18 = ssub.s32 %s13, 1
      %s19 = ssub.s32 %s13, 2
      %s20 = sadd.s32 %s13, 1
      %s21 = ssub.s32 %s13, %s20
      %p22 = scmp.eq.s32.totalorder %s21, 0
      %s24 = sadd.s32 %s23, 1
      %s25 = scalar_select %p22, %s23, %s24
      %p28 = pneg %p22
      %p29 = scmp.eq.s32.totalorder %s13, 1
      %p30 = por %p28, %p29
      %p31 = scmp.ne.s32.totalorder %s23, %s26
      %p32 = scmp.eq.s32.totalorder %s13, 0
      %p33 = por %p31, %p32
      %p34 = scmp.ne.s32.totalorder %s23, %s26
      %p35 = scmp.eq.s32.totalorder %s18, 1
      %p36 = por %p34, %p35
      %p37 = scmp.ne.s32.totalorder %s26, %s27
      %p38 = scmp.eq.s32.totalorder %s18, 0
      %p39 = por %p37, %p38
      %p40 = scmp.ne.s32.totalorder %s26, %s27
      %p41 = scmp.eq.s32.totalorder %s19, 1
      %p42 = por %p40, %p41
      %p44 = scmp.ne.s32.totalorder %s27, %s43
      %p45 = scmp.eq.s32.totalorder %s19, 0
      %p46 = por %p44, %p45
      %s48 = sadd.s32 %s47, 1
      %p51 = scmp.eq.s32.totalorder %s13, 1
      %p52 = scmp.ne.s32.totalorder %s47, %s49
      %p53 = scmp.eq.s32.totalorder %s13, 0
      %p54 = por %p52, %p53
      %p55 = scmp.ne.s32.totalorder %s47, %s49
      %p56 = scmp.eq.s32.totalorder %s18, 1
      %p57 = por %p55, %p56
      %p58 = scmp.ne.s32.totalorder %s49, %s50
      %p59 = scmp.eq.s32.totalorder %s18, 0
      %p60 = por %p58, %p59
      %p61 = scmp.ne.s32.totalorder %s49, %s50
      %p62 = scmp.eq.s32.totalorder %s19, 1
      %p63 = por %p61, %p62
      %p65 = scmp.ne.s32.totalorder %s50, %s64
      %p66 = scmp.eq.s32.totalorder %s19, 0
      %p67 = por %p65, %p66
      %s69 = sadd.s32 %s68, 1
      %p72 = scmp.eq.s32.totalorder %s13, 1
      %p73 = scmp.ne.s32.totalorder %s68, %s70
      %p74 = scmp.eq.s32.totalorder %s13, 0
      %p75 = por %p73, %p74
      %p76 = scmp.ne.s32.totalorder %s68, %s70
      %p77 = scmp.eq.s32.totalorder %s18, 1
      %p78 = por %p76, %p77
      %p79 = scmp.ne.s32.totalorder %s70, %s71
      %p80 = scmp.eq.s32.totalorder %s18, 0
      %p81 = por %p79, %p80
      %p82 = scmp.ne.s32.totalorder %s70, %s71
      %p83 = scmp.eq.s32.totalorder %s19, 1
      %p84 = por %p82, %p83
      %p86 = scmp.ne.s32.totalorder %s71, %s85
      %p87 = scmp.eq.s32.totalorder %s19, 0
      %p88 = por %p86, %p87
      %s90 = sadd.s32 %s89, 1
      %p93 = scmp.eq.s32.totalorder %s13, 1
      %p94 = scmp.ne.s32.totalorder %s89, %s91
      %p95 = scmp.eq.s32.totalorder %s13, 0
      %p96 = por %p94, %p95
      %p97 = scmp.ne.s32.totalorder %s89, %s91
      %p98 = scmp.eq.s32.totalorder %s18, 1
      %p99 = por %p97, %p98
      %p100 = scmp.ne.s32.totalorder %s91, %s92
      %p101 = scmp.eq.s32.totalorder %s18, 0
      %p102 = por %p100, %p101
      %p103 = scmp.ne.s32.totalorder %s91, %s92
      %p104 = scmp.eq.s32.totalorder %s19, 1
      %p105 = por %p103, %p104
      %p107 = scmp.ne.s32.totalorder %s92, %s106
      %p108 = scmp.eq.s32.totalorder %s19, 0
      %p109 = por %p107, %p108
      %s110 = ssub.s32 %s13, %s20
      %p111 = scmp.eq.s32.totalorder %s110, 0
      %s113 = sadd.s32 %s112, 1
      %s114 = scalar_select %p111, %s112, %s113
      %p117 = pneg %p111
      %p118 = scmp.eq.s32.totalorder %s13, 1
      %p119 = por %p117, %p118
      %p120 = scmp.ne.s32.totalorder %s112, %s115
      %p121 = scmp.eq.s32.totalorder %s13, 0
      %p122 = por %p120, %p121
      %p123 = scmp.ne.s32.totalorder %s112, %s115
      %p124 = scmp.eq.s32.totalorder %s18, 1
      %p125 = por %p123, %p124
      %p126 = scmp.ne.s32.totalorder %s115, %s116
      %p127 = scmp.eq.s32.totalorder %s18, 0
      %p128 = por %p126, %p127
      %p129 = scmp.ne.s32.totalorder %s115, %s116
      %p130 = scmp.eq.s32.totalorder %s19, 1
      %p131 = por %p129, %p130
      %p133 = scmp.ne.s32.totalorder %s116, %s132
      %p134 = scmp.eq.s32.totalorder %s19, 0
      %p135 = por %p133, %p134
      %p136 = scmp.le.s32.totalorder 1, %s13
      %p137 = scmp.lt.s32.totalorder %s13, 3
      %p138 = pnand %p136, %p137
      %p139 = pneg %p138
      // Predicated region
      $region9: #{tpu_custom_call.1} parent=5 // pred_check
        _
      $region10: #{tpu_custom_call.1} parent=5 // pred_check_branch
        %141 = sbr.rel (%p138) target = $region12
      $region11: #{tpu_custom_call.1} parent=5 // pred_region
        %s142 = ssub.s32 %s13, 1
        // Predicated region
        $region13: #{tpu_custom_call.1} parent=11 // pred_check
          %p143 = pneg %p60
        $region14: #{tpu_custom_call.1} parent=11 // pred_check_branch
          %145 = sbr.rel (%p143) target = $region16
        $region15: #{tpu_custom_call.1} parent=11 // pred_region
          _
        $region16: #{tpu_custom_call.1} parent=11 // pred_fallthru
          _
        // Predicated region
        $region17: #{tpu_custom_call.1} parent=11 // pred_check
          %p146 = pneg %p81
        $region18: #{tpu_custom_call.1} parent=11 // pred_check_branch
          %148 = sbr.rel (%p146) target = $region20
        $region19: #{tpu_custom_call.1} parent=11 // pred_region
          _
        $region20: #{tpu_custom_call.1} parent=11 // pred_fallthru
          _
        // Predicated region
        $region21: #{tpu_custom_call.1} parent=11 // pred_check
          %p149 = pneg %p102
        $region22: #{tpu_custom_call.1} parent=11 // pred_check_branch
          %151 = sbr.rel (%p149) target = $region24
        $region23: #{tpu_custom_call.1} parent=11 // pred_region
          _
        $region24: #{tpu_custom_call.1} parent=11 // pred_fallthru
          _
      $region12: #{tpu_custom_call.1} parent=5 // pred_fallthru
        _
      %p152 = scmp.lt.s32.totalorder %s13, 2
      // Predicated region
      $region25: #{tpu_custom_call.1} parent=5 // pred_check
        %p153 = pneg %p152
      $region26: #{tpu_custom_call.1} parent=5 // pred_check_branch
        %155 = sbr.rel (%p153) target = $region28
      $region27: #{tpu_custom_call.1} parent=5 // pred_region
        // Predicated region
        $region29: #{tpu_custom_call.1} parent=27 // pred_check
          %p156 = pneg %p33
        $region30: #{tpu_custom_call.1} parent=27 // pred_check_branch
          %158 = sbr.rel (%p156) target = $region32
        $region31: #{tpu_custom_call.1} parent=27 // pred_region
          %p159 = scmp.lt.s32.totalorder %s13, 1
          %s160 = scalar_select %p159, %s13, 1
          %s161 = smul.addr %s160, 8
          %s162 = smul.addr %s161, 8
          %s163 = scalar_lea.vmem %s0, %s162
        $region32: #{tpu_custom_call.1} parent=27 // pred_fallthru
          _
      $region28: #{tpu_custom_call.1} parent=5 // pred_fallthru
        _
      %p164 = scmp.le.s32.totalorder 1, %s13
      %p165 = scmp.lt.s32.totalorder %s13, 3
      %p166 = pnand %p164, %p165
      %p167 = pneg %p166
      // Predicated region
      $region33: #{tpu_custom_call.1} parent=5 // pred_check
        _
      $region34: #{tpu_custom_call.1} parent=5 // pred_check_branch
        %169 = sbr.rel (%p166) target = $region36
      $region35: #{tpu_custom_call.1} parent=5 // pred_region
        %s170 = ssub.s32 %s13, 1
        %p171 = scmp.lt.s32.totalorder %s18, 1
        %s172 = scalar_select %p171, %s18, 1
        %s173 = smul.addr %s172, 8
        %s174 = smul.addr %s173, 8
        %s175 = scalar_lea.vmem %s0, %s174
        %p176 = pneg %p39
        %p177 = pneg %p36
        %p178 = pneg %p60
        %p179 = pneg %p57
        %p180 = pneg %p81
        %p181 = pneg %p78
        %p182 = pneg %p102
        %p183 = pneg %p99
        %p184 = pneg %p128
        %p185 = pneg %p125
        %s186 = sand.u32 %s115, 1
        %s187 = scalar_lea.sflag [#allocation3], %s186
        %s188 = sand.u32 %s115, 1
        %s189 = smul.addr %s188, 64
        %s190 = scalar_lea.vmem [#allocation2], %s189
        %p191 = scmp.lt.s32.totalorder %s18, 1
        %s192 = scalar_select %p191, %s18, 1
        %s193 = smul.addr %s192, 8
        %s194 = smul.addr %s193, 8
        %s195 = scalar_lea.vmem %s0, %s194
        %v196 = vlaneseq
        %v197 = vand.u32 %v196, 127
        %v198 = vadd.s32 %v197, 128
        %v199 = vlaneseq
        %v200 = vshrl.u32 %v199, 7
        %v201 = vmul.u32 %v200, 64
        %vm202 = vcmp.ge.s32.totalorder %v197, %v201
        %vm203 = vcmp.ge.s32.totalorder %v198, %v201
        %v204 = vadd.s32 %v201, 64
        %vm205 = vcmp.lt.s32.totalorder %v197, %v204
        %vm206 = vcmp.lt.s32.totalorder %v198, %v204
        %vm207 = vmand %vm202, %vm205
        %vm208 = vmand %vm203, %vm206
        %v209 = vsel %vm207, 1, 0
        %v210 = vsel %vm208, 1, 0
        %v211 = vcvt.s32.f32 %v209
        %v212 = vcvt.s32.f32 %v210
        %v213 = vld [vmem:[%s195] sm:$0xff]
        %v214 = vld [vmem:[%s195 + $0x8] sm:$0xff]
        %v215 = vld [vmem:[%s195 + $0x10] sm:$0xff]
        %v216 = vld [vmem:[%s195 + $0x18] sm:$0xff]
        %v217 = vld [vmem:[%s195 + $0x20] sm:$0xff]
        %v218 = vld [vmem:[%s195 + $0x28] sm:$0xff]
        %v219 = vld [vmem:[%s195 + $0x30] sm:$0xff]
        %v220 = vld [vmem:[%s195 + $0x38] sm:$0xff]
        %v221 = vmul.f32 %v213, %v213
        %v222 = vmul.f32 %v214, %v214
        %v223 = vmul.f32 %v215, %v215
        %v224 = vmul.f32 %v216, %v216
        %v225 = vmul.f32 %v217, %v217
        %v226 = vmul.f32 %v218, %v218
        %v227 = vmul.f32 %v219, %v219
        %v228 = vmul.f32 %v220, %v220
        %v229 = vadd.f32 %v213, %v214
        %230 = vadd.xlane.f32.xlu0 %v229
        %v231 = vpop.xlane.xlu0 %230
        %v232 = vadd.f32 %v215, %v216
        %233 = vadd.xlane.f32.xlu0 %v232
        %v234 = vpop.xlane.xlu0 %233
        %v235 = vadd.f32 %v217, %v218
        %236 = vadd.xlane.f32.xlu0 %v235
        %v237 = vpop.xlane.xlu0 %236
        %v238 = vadd.f32 %v219, %v220
        %239 = vadd.xlane.f32.xlu0 %v238
        %v240 = vpop.xlane.xlu0 %239
        %v241 = vadd.f32 %v221, %v222
        %242 = vadd.xlane.f32.xlu0 %v241
        %v243 = vpop.xlane.xlu0 %242
        %v244 = vadd.f32 %v223, %v224
        %245 = vadd.xlane.f32.xlu0 %v244
        %v246 = vpop.xlane.xlu0 %245
        %v247 = vadd.f32 %v225, %v226
        %248 = vadd.xlane.f32.xlu0 %v247
        %v249 = vpop.xlane.xlu0 %248
        %v250 = vadd.f32 %v227, %v228
        %251 = vadd.xlane.f32.xlu0 %v250
        %v252 = vpop.xlane.xlu0 %251
        %vm253 = vcmask 7168
        %v254 = vsel %vm253, %v231, 0.0
        %v255 = vsel %vm253, %v234, 0.0
        %v256 = vadd.f32 %v254, %v255
        %v257 = vsel %vm253, %v237, 0.0
        %v258 = vadd.f32 %v256, %v257
        %v259 = vsel %vm253, %v240, 0.0
        %v260 = vadd.f32 %v258, %v259
        %261 = vadd.xlane.f32.xlu0 %v260
        %v262 = vpop.xlane.xlu0 %261
        %v263 = vrot.slane %v262, 4
        %v264 = vadd.f32 %v262, %v263
        %v265 = vrot.slane %v264, 2
        %v266 = vadd.f32 %v264, %v265
        %v267 = vrot.slane %v266, 1
        %v268 = vadd.f32 %v266, %v267
        %s269 = vtos %v268
        %v270 = vstv %s269
        %v271 = vmul.f32 %v270, 0.00012207031
        %v272 = vsel %vm253, %v243, 0.0
        %v273 = vsel %vm253, %v246, 0.0
        %v274 = vadd.f32 %v272, %v273
        %v275 = vsel %vm253, %v249, 0.0
        %v276 = vadd.f32 %v274, %v275
        %v277 = vsel %vm253, %v252, 0.0
        %v278 = vadd.f32 %v276, %v277
        %279 = vadd.xlane.f32.xlu0 %v278
        %v280 = vpop.xlane.xlu0 %279
        %v281 = vrot.slane %v280, 4
        %v282 = vadd.f32 %v280, %v281
        %v283 = vrot.slane %v282, 2
        %v284 = vadd.f32 %v282, %v283
        %v285 = vrot.slane %v284, 1
        %v286 = vadd.f32 %v284, %v285
        %s287 = vtos %v286
        %v288 = vstv %s287
        %v289 = vmul.f32 %v288, 0.00012207031
        %v290 = vmul.f32 %v271, %v271
        %v291 = vsub.f32 %v289, %v290
        %v292 = vmax.f32 %v291, 0.0
        %v293 = vsub.f32 %v213, %v271
        %v294 = vsub.f32 %v214, %v271
        %v295 = vsub.f32 %v215, %v271
        %v296 = vsub.f32 %v216, %v271
        %v297 = vsub.f32 %v217, %v271
        %v298 = vsub.f32 %v218, %v271
        %v299 = vsub.f32 %v219, %v271
        %v300 = vsub.f32 %v220, %v271
        %v301 = vadd.f32 %v292, 1e-05
        %v302 = vrsqrt.pop %v301
        %v303 = vmul.f32 %v293, %v302
        %v304 = vmul.f32 %v294, %v302
        %v305 = vmul.f32 %v295, %v302
        %v306 = vmul.f32 %v296, %v302
        %v307 = vmul.f32 %v297, %v302
        %v308 = vmul.f32 %v298, %v302
        %v309 = vmul.f32 %v299, %v302
        %v310 = vmul.f32 %v300, %v302
        %v311 = vld [vmem:[%s1] sm:$0xff]
        %v312 = vld [vmem:[%s1 + $0x8] sm:$0xff]
        %v313 = vld [vmem:[%s1 + $0x10] sm:$0xff]
        %v314 = vld [vmem:[%s1 + $0x18] sm:$0xff]
        %v315 = vld [vmem:[%s1 + $0x20] sm:$0xff]
        %v316 = vld [vmem:[%s1 + $0x28] sm:$0xff]
        %v317 = vld [vmem:[%s1 + $0x30] sm:$0xff]
        %v318 = vld [vmem:[%s1 + $0x38] sm:$0xff]
        %v319 = vld [vmem:[%s1 + $0x40] sm:$0xff]
        %v320 = vld [vmem:[%s3] sm:$0xff]
        %v321 = vld [vmem:[%s3 + $0x8] sm:$0xff]
        %v322 = vld [vmem:[%s3 + $0x10] sm:$0xff]
        %v323 = vld [vmem:[%s3 + $0x18] sm:$0xff]
        %v324 = vld [vmem:[%s3 + $0x20] sm:$0xff]
        %v325 = vld [vmem:[%s3 + $0x28] sm:$0xff]
        %v326 = vld [vmem:[%s3 + $0x30] sm:$0xff]
        %v327 = vld [vmem:[%s3 + $0x38] sm:$0xff]
        %v328 = vld [vmem:[%s3 + $0x40] sm:$0xff]
        %330 = vset.pattern.permute.xlu0 0
        %331 = vperm.xlu0 %330, %v320
        %v332 = vpop.permute.xlu0 %331
        %335 = vset.pattern.permute.xlu0 0
        %336 = vperm.xlu0 %335, %v321
        %v337 = vpop.permute.xlu0 %336
        %340 = vset.pattern.permute.xlu0 0
        %341 = vperm.xlu0 %340, %v322
        %v342 = vpop.permute.xlu0 %341
        %345 = vset.pattern.permute.xlu0 0
        %346 = vperm.xlu0 %345, %v323
        %v347 = vpop.permute.xlu0 %346
        %350 = vset.pattern.permute.xlu0 0
        %351 = vperm.xlu0 %350, %v324
        %v352 = vpop.permute.xlu0 %351
        %355 = vset.pattern.permute.xlu0 0
        %356 = vperm.xlu0 %355, %v325
        %v357 = vpop.permute.xlu0 %356
        %360 = vset.pattern.permute.xlu0 0
        %361 = vperm.xlu0 %360, %v326
        %v362 = vpop.permute.xlu0 %361
        %365 = vset.pattern.permute.xlu0 0
        %366 = vperm.xlu0 %365, %v327
        %v367 = vpop.permute.xlu0 %366
        %370 = vset.pattern.permute.xlu0 0
        %371 = vperm.xlu0 %370, %v328
        %v372 = vpop.permute.xlu0 %371
        %vm374 = vcmask 261120
        %v376 = vsel %vm374, %v311, 0
        %v379 = vsel %vm374, %v312, 0
        %v382 = vsel %vm374, %v313, 0
        %v385 = vsel %vm374, %v314, 0
        %v388 = vsel %vm374, %v315, 0
        %v391 = vsel %vm374, %v316, 0
        %v394 = vsel %vm374, %v317, 0
        %v397 = vsel %vm374, %v318, 0
        %v400 = vsel %vm374, %v319, 0
        %402 = vmatprep.subr.mxu0 0.0
        %403 = vmatpush1.msra.mxu0 0.0
        %404 = vmatprep.subr.mxu0 0.0
        %405 = vmatpush1.msra.mxu0 0.0
        %406 = vmatprep.subr.mxu0 0.0
        %407 = vmatpush1.msra.mxu0 0.0
        %408 = vmatprep.subr.mxu0 0.0
        %409 = vmatpush1.msra.mxu0 0.0
        %410 = vmatprep.subr.mxu0 0.0
        %411 = vmatpush1.msra.mxu0 0.0
        %412 = vmatprep.subr.mxu0 0.0
        %413 = vmatpush1.msra.mxu0 0.0
        %414 = vmatprep.subr.mxu0 0.0
        %415 = vmatpush1.msra.mxu0 0.0
        %416 = vmatprep.subr.mxu0 0.0
        %417 = vmatpush1.msra.mxu0 0.0
        %418 = vmatprep.subr.mxu0 0.0
        %419 = vmatpush1.msra.mxu0 0.0
        %420 = vmatprep.subr.mxu0 0.0
        %421 = vmatpush1.msra.mxu0 0.0
        %422 = vmatprep.subr.mxu0 0.0
        %423 = vmatpush1.msra.mxu0 0.0
        %424 = vmatprep.subr.mxu0 0.0
        %425 = vmatpush1.msra.mxu0 0.0
        %426 = vmatprep.subr.mxu0 %v310
        %427 = vmatpush1.msra.mxu0 %v309
        %428 = vmatprep.subr.mxu0 %v308
        %429 = vmatpush1.msra.mxu0 %v307
        %430 = vmatprep.subr.mxu0 %v306
        %431 = vmatpush1.msra.mxu0 %v305
        %432 = vmatprep.subr.mxu0 %v304
        %433 = vmatpush1.msra.mxu0 %v303
        %434 = vmatprep.subr.mxu0 0.0
        %435 = vmatpush2.msra.mxu0 0.0
        %436 = vmatprep.subr.mxu0 0.0
        %437 = vmatpush2.msra.mxu0 0.0
        %438 = vmatprep.subr.mxu0 0.0
        %439 = vmatpush2.msra.mxu0 0.0
        %440 = vmatprep.subr.mxu0 0.0
        %441 = vmatpush2.msra.mxu0 0.0
        %442 = vmatprep.subr.mxu0 0.0
        %443 = vmatpush2.msra.mxu0 0.0
        %444 = vmatprep.subr.mxu0 0.0
        %445 = vmatpush2.msra.mxu0 0.0
        %446 = vmatprep.subr.mxu0 0.0
        %447 = vmatpush2.msra.mxu0 0.0
        %448 = vmatprep.subr.mxu0 0.0
        %449 = vmatpush2.msra.mxu0 0.0
        %450 = vmatprep.subr.mxu0 0.0
        %451 = vmatpush2.msra.mxu0 0.0
        %452 = vmatprep.subr.mxu0 0.0
        %453 = vmatpush2.msra.mxu0 0.0
        %454 = vmatprep.subr.mxu0 0.0
        %455 = vmatpush2.msra.mxu0 0.0
        %456 = vmatprep.subr.mxu0 0.0
        %457 = vmatpush2.msra.mxu0 0.0
        %458 = vmatprep.subr.mxu0 0.0
        %459 = vmatpush2.msra.mxu0 0.0
        %460 = vmatprep.subr.mxu0 0.0
        %461 = vmatpush2.msra.mxu0 0.0
        %462 = vmatprep.subr.mxu0 0.0
        %463 = vmatpush2.msra.mxu0 0.0
        %464 = vmatprep.subr.mxu0 0.0
        %465 = vmatpush2.msra.mxu0 0.0
        %466 = vmatprep.mubr.f32.mxu0 0.0
        %467 = vmatmul.mubr.f32.gmra.mxu0 %v376
        %v468 = vpop.f32.mrf.mxu0
        %v469 = vadd.f32 %v332, %v468
        %v470 = vpop.f32.mrf.mxu0
        %v471 = vadd.f32 %v332, %v470
        %472 = vmatprep.mubr.f32.mxu0 0.0
        %473 = vmatmul.mubr.f32.gmra.mxu0 %v379
        %v474 = vpop.f32.mrf.mxu0
        %v475 = vadd.f32 %v337, %v474
        %v476 = vpop.f32.mrf.mxu0
        %v477 = vadd.f32 %v337, %v476
        %478 = vmatprep.mubr.f32.mxu0 0.0
        %479 = vmatmul.mubr.f32.gmra.mxu0 %v382
        %v480 = vpop.f32.mrf.mxu0
        %v481 = vadd.f32 %v342, %v480
        %v482 = vpop.f32.mrf.mxu0
        %v483 = vadd.f32 %v342, %v482
        %484 = vmatprep.mubr.f32.mxu0 0.0
        %485 = vmatmul.mubr.f32.gmra.mxu0 %v385
        %v486 = vpop.f32.mrf.mxu0
        %v487 = vadd.f32 %v347, %v486
        %v488 = vpop.f32.mrf.mxu0
        %v489 = vadd.f32 %v347, %v488
        %490 = vmatprep.mubr.f32.mxu0 0.0
        %491 = vmatmul.mubr.f32.gmra.mxu0 %v388
        %v492 = vpop.f32.mrf.mxu0
        %v493 = vadd.f32 %v352, %v492
        %v494 = vpop.f32.mrf.mxu0
        %v495 = vadd.f32 %v352, %v494
        %496 = vmatprep.mubr.f32.mxu0 0.0
        %497 = vmatmul.mubr.f32.gmra.mxu0 %v391
        %v498 = vpop.f32.mrf.mxu0
        %v499 = vadd.f32 %v357, %v498
        %v500 = vpop.f32.mrf.mxu0
        %v501 = vadd.f32 %v357, %v500
        %502 = vmatprep.mubr.f32.mxu0 0.0
        %503 = vmatmul.mubr.f32.gmra.mxu0 %v394
        %v504 = vpop.f32.mrf.mxu0
        %v505 = vadd.f32 %v362, %v504
        %v506 = vpop.f32.mrf.mxu0
        %v507 = vadd.f32 %v362, %v506
        %508 = vmatprep.mubr.f32.mxu0 0.0
        %509 = vmatmul.mubr.f32.gmra.mxu0 %v397
        %v510 = vpop.f32.mrf.mxu0
        %v511 = vadd.f32 %v367, %v510
        %v512 = vpop.f32.mrf.mxu0
        %v513 = vadd.f32 %v367, %v512
        %514 = vmatprep.mubr.f32.mxu0 0.0
        %515 = vmatmul.mubr.f32.gmra.mxu0 %v400
        %v516 = vpop.f32.mrf.mxu0
        %v517 = vadd.f32 %v372, %v516
        %v518 = vpop.f32.mrf.mxu0
        %v519 = vadd.f32 %v372, %v518
        %520 = vdwg.mxu0
        %vm521 = vcmask 1040384
        %v522 = vsel %vm521, %v469, -inf
        %v523 = vsel %vm521, %v471, -inf
        %v524 = vmax.f32 %v522, %v523
        %525 = vmax.xlane.f32.xlu0 %v524
        %v526 = vpop.xlane.xlu0 %525
        %v527 = vrot.slane %v526, 4
        %v528 = vmax.f32 %v526, %v527
        %v529 = vrot.slane %v528, 2
        %v530 = vmax.f32 %v528, %v529
        %v531 = vrot.slane %v530, 1
        %v532 = vmax.f32 %v530, %v531
        %s533 = vtos %v532
        %v534 = vstv %s533
        %v535 = vsub.f32 %v469, %v534
        %v536 = vsub.f32 %v471, %v534
        %v537 = vmul.f32 %v535, 1.442695
        %v538 = vpow.pop %v537
        %v539 = vmul.f32 %v536, 1.442695
        %v540 = vpow.pop %v539
        %v541 = vlaneseq
        %v542 = vshrl.u32 %v541, 7
        %v543 = vsub.s32 0, %v542
        %v544 = vrot.slane %v538, %v543
        %v545 = vlaneseq
        %v546 = vshrl.u32 %v545, 7
        %v547 = vsub.s32 0, %v546
        %v548 = vrot.slane %v540, %v547
        %v549 = vmul.f32 %v211, %v544
        %v550 = vmul.f32 %v212, %v548
        %vm551 = vcmask 1043456
        %v552 = vsel %vm551, %v549, 0.0
        %v553 = vsel %vm551, %v550, 0.0
        %v554 = vadd.f32 %v552, %v553
        %555 = vadd.xlane.f32.xlu0 %v554
        %v556 = vpop.xlane.xlu0 %555
        %v557 = vrcp.pop %v556
        %v558 = vmul.f32 %v556, %v557
        %v559 = vsub.f32 2.0, %v558
        %v560 = vmul.f32 %v557, %v559
        %v561 = vmul.f32 %v549, %v560
        %v562 = vmul.f32 %v550, %v560
        %563 = vmatprep.subr.mxu0 0.0
        %564 = vmatpush1.xpose.msra.mxu0 0.0
        %565 = vmatprep.subr.mxu0 0.0
        %566 = vmatpush1.xpose.msra.mxu0 0.0
        %567 = vmatprep.subr.mxu0 0.0
        %568 = vmatpush1.xpose.msra.mxu0 0.0
        %569 = vmatprep.subr.mxu0 0.0
        %570 = vmatpush1.xpose.msra.mxu0 0.0
        %571 = vmatprep.subr.mxu0 0.0
        %572 = vmatpush1.xpose.msra.mxu0 0.0
        %573 = vmatprep.subr.mxu0 0.0
        %574 = vmatpush1.xpose.msra.mxu0 0.0
        %575 = vmatprep.subr.mxu0 0.0
        %576 = vmatpush1.xpose.msra.mxu0 0.0
        %577 = vmatprep.subr.mxu0 0.0
        %578 = vmatpush1.xpose.msra.mxu0 0.0
        %579 = vmatprep.subr.mxu0 0.0
        %580 = vmatpush1.xpose.msra.mxu0 0.0
        %581 = vmatprep.subr.mxu0 0.0
        %582 = vmatpush1.xpose.msra.mxu0 0.0
        %583 = vmatprep.subr.mxu0 0.0
        %584 = vmatpush1.xpose.msra.mxu0 0.0
        %585 = vmatprep.subr.mxu0 0.0
        %586 = vmatpush1.xpose.msra.mxu0 0.0
        %587 = vmatprep.subr.mxu0 0.0
        %588 = vmatpush1.xpose.msra.mxu0 0.0
        %589 = vmatprep.subr.mxu0 0.0
        %590 = vmatpush1.xpose.msra.mxu0 0.0
        %591 = vmatprep.subr.mxu0 0.0
        %592 = vmatpush1.xpose.msra.mxu0 0.0
        %593 = vmatprep.subr.mxu0 %v562
        %594 = vmatpush1.xpose.msra.mxu0 %v561
        %595 = vmatprep.subr.mxu0 0.0
        %596 = vmatpush2.xpose.msra.mxu0 0.0
        %597 = vmatprep.subr.mxu0 0.0
        %598 = vmatpush2.xpose.msra.mxu0 0.0
        %599 = vmatprep.subr.mxu0 0.0
        %600 = vmatpush2.xpose.msra.mxu0 0.0
        %601 = vmatprep.subr.mxu0 0.0
        %602 = vmatpush2.xpose.msra.mxu0 0.0
        %603 = vmatprep.subr.mxu0 0.0
        %604 = vmatpush2.xpose.msra.mxu0 0.0
        %605 = vmatprep.subr.mxu0 0.0
        %606 = vmatpush2.xpose.msra.mxu0 0.0
        %607 = vmatprep.subr.mxu0 0.0
        %608 = vmatpush2.xpose.msra.mxu0 0.0
        %609 = vmatprep.subr.mxu0 0.0
        %610 = vmatpush2.xpose.msra.mxu0 0.0
        %611 = vmatprep.subr.mxu0 0.0
        %612 = vmatpush2.xpose.msra.mxu0 0.0
        %613 = vmatprep.subr.mxu0 0.0
        %614 = vmatpush2.xpose.msra.mxu0 0.0
        %615 = vmatprep.subr.mxu0 0.0
        %616 = vmatpush2.xpose.msra.mxu0 0.0
        %617 = vmatprep.subr.mxu0 0.0
        %618 = vmatpush2.xpose.msra.mxu0 0.0
        %619 = vmatprep.subr.mxu0 0.0
        %620 = vmatpush2.xpose.msra.mxu0 0.0
        %621 = vmatprep.subr.mxu0 0.0
        %622 = vmatpush2.xpose.msra.mxu0 0.0
        %623 = vmatprep.subr.mxu0 0.0
        %624 = vmatpush2.xpose.msra.mxu0 0.0
        %625 = vmatprep.subr.mxu0 0.0
        %626 = vmatpush2.xpose.msra.mxu0 0.0
        %627 = vmatprep.mubr.f32.mxu0 %v477
        %628 = vmatmul.mubr.f32.gmra.mxu0 %v475
        %v629 = vpop.f32.mrf.mxu0
        %v630 = vadd.f32 0.0, %v629
        %v631 = vpop.f32.mrf.mxu0
        %632 = vmatprep.mubr.f32.mxu0 %v483
        %633 = vmatmul.mubr.f32.gmra.mxu0 %v481
        %v634 = vpop.f32.mrf.mxu0
        %v635 = vadd.f32 0.0, %v634
        %v636 = vpop.f32.mrf.mxu0
        %637 = vmatprep.mubr.f32.mxu0 %v489
        %638 = vmatmul.mubr.f32.gmra.mxu0 %v487
        %v639 = vpop.f32.mrf.mxu0
        %v640 = vadd.f32 0.0, %v639
        %v641 = vpop.f32.mrf.mxu0
        %642 = vmatprep.mubr.f32.mxu0 %v495
        %643 = vmatmul.mubr.f32.gmra.mxu0 %v493
        %v644 = vpop.f32.mrf.mxu0
        %v645 = vadd.f32 0.0, %v644
        %v646 = vpop.f32.mrf.mxu0
        %647 = vdwg.mxu0
        %vm648 = vcmask 31744
        %v650 = vsel %vm648, %v630, 0
        %v653 = vsel %vm648, %v635, 0
        %v656 = vsel %vm648, %v640, 0
        %v659 = vsel %vm648, %v645, 0
        %v662 = vsel %vm551, %v211, 0
        %v665 = vsel %vm551, %v212, 0
        %667 = vmatprep.subr.mxu0 0.0
        %668 = vmatpush1.msra.mxu0 0.0
        %669 = vmatprep.subr.mxu0 0.0
        %670 = vmatpush1.msra.mxu0 0.0
        %671 = vmatprep.subr.mxu0 0.0
        %672 = vmatpush1.msra.mxu0 0.0
        %673 = vmatprep.subr.mxu0 0.0
        %674 = vmatpush1.msra.mxu0 0.0
        %675 = vmatprep.subr.mxu0 0.0
        %676 = vmatpush1.msra.mxu0 0.0
        %677 = vmatprep.subr.mxu0 0.0
        %678 = vmatpush1.msra.mxu0 0.0
        %679 = vmatprep.subr.mxu0 0.0
        %680 = vmatpush1.msra.mxu0 0.0
        %681 = vmatprep.subr.mxu0 0.0
        %682 = vmatpush1.msra.mxu0 0.0
        %683 = vmatprep.subr.mxu0 0.0
        %684 = vmatpush1.msra.mxu0 0.0
        %685 = vmatprep.subr.mxu0 0.0
        %686 = vmatpush1.msra.mxu0 0.0
        %687 = vmatprep.subr.mxu0 0.0
        %688 = vmatpush1.msra.mxu0 0.0
        %689 = vmatprep.subr.mxu0 0.0
        %690 = vmatpush1.msra.mxu0 0.0
        %691 = vmatprep.subr.mxu0 0.0
        %692 = vmatpush1.msra.mxu0 0.0
        %693 = vmatprep.subr.mxu0 0.0
        %694 = vmatpush1.msra.mxu0 0.0
        %695 = vmatprep.subr.mxu0 0.0
        %696 = vmatpush1.msra.mxu0 0.0
        %697 = vmatprep.subr.mxu0 %v665
        %698 = vmatpush1.msra.mxu0 %v662
        %699 = vmatprep.subr.mxu0 0.0
        %700 = vmatpush2.msra.mxu0 0.0
        %701 = vmatprep.subr.mxu0 0.0
        %702 = vmatpush2.msra.mxu0 0.0
        %703 = vmatprep.subr.mxu0 0.0
        %704 = vmatpush2.msra.mxu0 0.0
        %705 = vmatprep.subr.mxu0 0.0
        %706 = vmatpush2.msra.mxu0 0.0
        %707 = vmatprep.subr.mxu0 0.0
        %708 = vmatpush2.msra.mxu0 0.0
        %709 = vmatprep.subr.mxu0 0.0
        %710 = vmatpush2.msra.mxu0 0.0
        %711 = vmatprep.subr.mxu0 0.0
        %712 = vmatpush2.msra.mxu0 0.0
        %713 = vmatprep.subr.mxu0 0.0
        %714 = vmatpush2.msra.mxu0 0.0
        %715 = vmatprep.subr.mxu0 0.0
        %716 = vmatpush2.msra.mxu0 0.0
        %717 = vmatprep.subr.mxu0 0.0
        %718 = vmatpush2.msra.mxu0 0.0
        %719 = vmatprep.subr.mxu0 0.0
        %720 = vmatpush2.msra.mxu0 0.0
        %721 = vmatprep.subr.mxu0 0.0
        %722 = vmatpush2.msra.mxu0 0.0
        %723 = vmatprep.subr.mxu0 0.0
        %724 = vmatpush2.msra.mxu0 0.0
        %725 = vmatprep.subr.mxu0 0.0
        %726 = vmatpush2.msra.mxu0 0.0
        %727 = vmatprep.subr.mxu0 0.0
        %728 = vmatpush2.msra.mxu0 0.0
        %729 = vmatprep.subr.mxu0 0.0
        %730 = vmatpush2.msra.mxu0 0.0
        %731 = vmatprep.mubr.f32.mxu0 0.0
        %732 = vmatmul.mubr.f32.gmra.mxu0 %v650
        %v733 = vpop.f32.mrf.mxu0
        %v734 = vadd.f32 0.0, %v733
        %v735 = vpop.f32.mrf.mxu0
        %v736 = vadd.f32 0.0, %v735
        %737 = vmatprep.mubr.f32.mxu0 0.0
        %738 = vmatmul.mubr.f32.gmra.mxu0 %v653
        %v739 = vpop.f32.mrf.mxu0
        %v740 = vadd.f32 0.0, %v739
        %v741 = vpop.f32.mrf.mxu0
        %v742 = vadd.f32 0.0, %v741
        %743 = vmatprep.mubr.f32.mxu0 0.0
        %744 = vmatmul.mubr.f32.gmra.mxu0 %v656
        %v745 = vpop.f32.mrf.mxu0
        %v746 = vadd.f32 0.0, %v745
        %v747 = vpop.f32.mrf.mxu0
        %v748 = vadd.f32 0.0, %v747
        %749 = vmatprep.mubr.f32.mxu0 0.0
        %750 = vmatmul.mubr.f32.gmra.mxu0 %v659
        %v751 = vpop.f32.mrf.mxu0
        %v752 = vadd.f32 0.0, %v751
        %v753 = vpop.f32.mrf.mxu0
        %v754 = vadd.f32 0.0, %v753
        %755 = vdwg.mxu0
        %v756 = vmax.f32 %v499, 0.0
        %v757 = vmax.f32 %v501, 0.0
        %v758 = vmax.f32 %v505, 0.0
        %v759 = vmax.f32 %v507, 0.0
        %v760 = vmax.f32 %v511, 0.0
        %v761 = vmax.f32 %v513, 0.0
        %v762 = vmax.f32 %v517, 0.0
        %v763 = vmax.f32 %v519, 0.0
        %v764 = vmul.f32 %v756, %v734
        %v765 = vmul.f32 %v757, %v736
        %v766 = vmul.f32 %v758, %v740
        %v767 = vmul.f32 %v759, %v742
        %v768 = vmul.f32 %v760, %v746
        %v769 = vmul.f32 %v761, %v748
        %v770 = vmul.f32 %v762, %v752
        %v771 = vmul.f32 %v763, %v754
        %v772 = vld [vmem:[%s1 + $0x48] sm:$0xff]
        %v773 = vld [vmem:[%s1 + $0x50] sm:$0xff]
        %v774 = vld [vmem:[%s1 + $0x58] sm:$0xff]
        %v775 = vld [vmem:[%s1 + $0x60] sm:$0xff]
        %v776 = vld [vmem:[%s3 + $0x48] sm:$0xff]
        %v777 = vld [vmem:[%s3 + $0x50] sm:$0xff]
        %v778 = vld [vmem:[%s3 + $0x58] sm:$0xff]
        %v779 = vld [vmem:[%s3 + $0x60] sm:$0xff]
        %781 = vset.pattern.permute.xlu0 0
        %782 = vperm.xlu0 %781, %v776
        %v783 = vpop.permute.xlu0 %782
        %786 = vset.pattern.permute.xlu0 0
        %787 = vperm.xlu0 %786, %v777
        %v788 = vpop.permute.xlu0 %787
        %791 = vset.pattern.permute.xlu0 0
        %792 = vperm.xlu0 %791, %v778
        %v793 = vpop.permute.xlu0 %792
        %796 = vset.pattern.permute.xlu0 0
        %797 = vperm.xlu0 %796, %v779
        %v798 = vpop.permute.xlu0 %797
        %v801 = vsel %vm374, %v772, 0
        %v804 = vsel %vm374, %v773, 0
        %v807 = vsel %vm374, %v774, 0
        %v810 = vsel %vm374, %v775, 0
        %812 = vmatprep.subr.mxu0 0.0
        %813 = vmatpush1.msra.mxu0 0.0
        %814 = vmatprep.subr.mxu0 0.0
        %815 = vmatpush1.msra.mxu0 0.0
        %816 = vmatprep.subr.mxu0 0.0
        %817 = vmatpush1.msra.mxu0 0.0
        %818 = vmatprep.subr.mxu0 0.0
        %819 = vmatpush1.msra.mxu0 0.0
        %820 = vmatprep.subr.mxu0 0.0
        %821 = vmatpush1.msra.mxu0 0.0
        %822 = vmatprep.subr.mxu0 0.0
        %823 = vmatpush1.msra.mxu0 0.0
        %824 = vmatprep.subr.mxu0 0.0
        %825 = vmatpush1.msra.mxu0 0.0
        %826 = vmatprep.subr.mxu0 0.0
        %827 = vmatpush1.msra.mxu0 0.0
        %828 = vmatprep.subr.mxu0 0.0
        %829 = vmatpush1.msra.mxu0 0.0
        %830 = vmatprep.subr.mxu0 0.0
        %831 = vmatpush1.msra.mxu0 0.0
        %832 = vmatprep.subr.mxu0 0.0
        %833 = vmatpush1.msra.mxu0 0.0
        %834 = vmatprep.subr.mxu0 0.0
        %835 = vmatpush1.msra.mxu0 0.0
        %836 = vmatprep.subr.mxu0 %v771
        %837 = vmatpush1.msra.mxu0 %v770
        %838 = vmatprep.subr.mxu0 %v769
        %839 = vmatpush1.msra.mxu0 %v768
        %840 = vmatprep.subr.mxu0 %v767
        %841 = vmatpush1.msra.mxu0 %v766
        %842 = vmatprep.subr.mxu0 %v765
        %843 = vmatpush1.msra.mxu0 %v764
        %844 = vmatprep.subr.mxu0 0.0
        %845 = vmatpush2.msra.mxu0 0.0
        %846 = vmatprep.subr.mxu0 0.0
        %847 = vmatpush2.msra.mxu0 0.0
        %848 = vmatprep.subr.mxu0 0.0
        %849 = vmatpush2.msra.mxu0 0.0
        %850 = vmatprep.subr.mxu0 0.0
        %851 = vmatpush2.msra.mxu0 0.0
        %852 = vmatprep.subr.mxu0 0.0
        %853 = vmatpush2.msra.mxu0 0.0
        %854 = vmatprep.subr.mxu0 0.0
        %855 = vmatpush2.msra.mxu0 0.0
        %856 = vmatprep.subr.mxu0 0.0
        %857 = vmatpush2.msra.mxu0 0.0
        %858 = vmatprep.subr.mxu0 0.0
        %859 = vmatpush2.msra.mxu0 0.0
        %860 = vmatprep.subr.mxu0 0.0
        %861 = vmatpush2.msra.mxu0 0.0
        %862 = vmatprep.subr.mxu0 0.0
        %863 = vmatpush2.msra.mxu0 0.0
        %864 = vmatprep.subr.mxu0 0.0
        %865 = vmatpush2.msra.mxu0 0.0
        %866 = vmatprep.subr.mxu0 0.0
        %867 = vmatpush2.msra.mxu0 0.0
        %868 = vmatprep.subr.mxu0 0.0
        %869 = vmatpush2.msra.mxu0 0.0
        %870 = vmatprep.subr.mxu0 0.0
        %871 = vmatpush2.msra.mxu0 0.0
        %872 = vmatprep.subr.mxu0 0.0
        %873 = vmatpush2.msra.mxu0 0.0
        %874 = vmatprep.subr.mxu0 0.0
        %875 = vmatpush2.msra.mxu0 0.0
        %876 = vmatprep.mubr.f32.mxu0 0.0
        %877 = vmatmul.mubr.f32.gmra.mxu0 %v801
        %v878 = vpop.f32.mrf.mxu0
        %v879 = vadd.f32 %v783, %v878
        %v880 = vpop.f32.mrf.mxu0
        %v881 = vadd.f32 %v783, %v880
        %882 = vmatprep.mubr.f32.mxu0 0.0
        %883 = vmatmul.mubr.f32.gmra.mxu0 %v804
        %v884 = vpop.f32.mrf.mxu0
        %v885 = vadd.f32 %v788, %v884
        %v886 = vpop.f32.mrf.mxu0
        %v887 = vadd.f32 %v788, %v886
        %888 = vmatprep.mubr.f32.mxu0 0.0
        %889 = vmatmul.mubr.f32.gmra.mxu0 %v807
        %v890 = vpop.f32.mrf.mxu0
        %v891 = vadd.f32 %v793, %v890
        %v892 = vpop.f32.mrf.mxu0
        %v893 = vadd.f32 %v793, %v892
        %894 = vmatprep.mubr.f32.mxu0 0.0
        %895 = vmatmul.mubr.f32.gmra.mxu0 %v810
        %v896 = vpop.f32.mrf.mxu0
        %v897 = vadd.f32 %v798, %v896
        %v898 = vpop.f32.mrf.mxu0
        %v899 = vadd.f32 %v798, %v898
        %900 = vdwg.mxu0
        %v901 = vadd.f32 %v213, %v879
        %v902 = vadd.f32 %v214, %v881
        %v903 = vadd.f32 %v215, %v885
        %v904 = vadd.f32 %v216, %v887
        %v905 = vadd.f32 %v217, %v891
        %v906 = vadd.f32 %v218, %v893
        %v907 = vadd.f32 %v219, %v897
        %v908 = vadd.f32 %v220, %v899
        %v909 = vmul.f32 %v901, %v901
        %v910 = vmul.f32 %v902, %v902
        %v911 = vmul.f32 %v903, %v903
        %v912 = vmul.f32 %v904, %v904
        %v913 = vmul.f32 %v905, %v905
        %v914 = vmul.f32 %v906, %v906
        %v915 = vmul.f32 %v907, %v907
        %v916 = vmul.f32 %v908, %v908
        %v917 = vadd.f32 %v901, %v902
        %918 = vadd.xlane.f32.xlu0 %v917
        %v919 = vpop.xlane.xlu0 %918
        %v920 = vadd.f32 %v903, %v904
        %921 = vadd.xlane.f32.xlu0 %v920
        %v922 = vpop.xlane.xlu0 %921
        %v923 = vadd.f32 %v905, %v906
        %924 = vadd.xlane.f32.xlu0 %v923
        %v925 = vpop.xlane.xlu0 %924
        %v926 = vadd.f32 %v907, %v908
        %927 = vadd.xlane.f32.xlu0 %v926
        %v928 = vpop.xlane.xlu0 %927
        %v929 = vadd.f32 %v909, %v910
        %930 = vadd.xlane.f32.xlu0 %v929
        %v931 = vpop.xlane.xlu0 %930
        %v932 = vadd.f32 %v911, %v912
        %933 = vadd.xlane.f32.xlu0 %v932
        %v934 = vpop.xlane.xlu0 %933
        %v935 = vadd.f32 %v913, %v914
        %936 = vadd.xlane.f32.xlu0 %v935
        %v937 = vpop.xlane.xlu0 %936
        %v938 = vadd.f32 %v915, %v916
        %939 = vadd.xlane.f32.xlu0 %v938
        %v940 = vpop.xlane.xlu0 %939
        %v941 = vsel %vm253, %v919, 0.0
        %v942 = vsel %vm253, %v922, 0.0
        %v943 = vadd.f32 %v941, %v942
        %v944 = vsel %vm253, %v925, 0.0
        %v945 = vadd.f32 %v943, %v944
        %v946 = vsel %vm253, %v928, 0.0
        %v947 = vadd.f32 %v945, %v946
        %948 = vadd.xlane.f32.xlu0 %v947
        %v949 = vpop.xlane.xlu0 %948
        %v950 = vrot.slane %v949, 4
        %v951 = vadd.f32 %v949, %v950
        %v952 = vrot.slane %v951, 2
        %v953 = vadd.f32 %v951, %v952
        %v954 = vrot.slane %v953, 1
        %v955 = vadd.f32 %v953, %v954
        %s956 = vtos %v955
        %v957 = vstv %s956
        %v958 = vmul.f32 %v957, 0.00012207031
        %v959 = vsel %vm253, %v931, 0.0
        %v960 = vsel %vm253, %v934, 0.0
        %v961 = vadd.f32 %v959, %v960
        %v962 = vsel %vm253, %v937, 0.0
        %v963 = vadd.f32 %v961, %v962
        %v964 = vsel %vm253, %v940, 0.0
        %v965 = vadd.f32 %v963, %v964
        %966 = vadd.xlane.f32.xlu0 %v965
        %v967 = vpop.xlane.xlu0 %966
        %v968 = vrot.slane %v967, 4
        %v969 = vadd.f32 %v967, %v968
        %v970 = vrot.slane %v969, 2
        %v971 = vadd.f32 %v969, %v970
        %v972 = vrot.slane %v971, 1
        %v973 = vadd.f32 %v971, %v972
        %s974 = vtos %v973
        %v975 = vstv %s974
        %v976 = vmul.f32 %v975, 0.00012207031
        %v977 = vmul.f32 %v958, %v958
        %v978 = vsub.f32 %v976, %v977
        %v979 = vmax.f32 %v978, 0.0
        %v980 = vsub.f32 %v901, %v958
        %v981 = vsub.f32 %v902, %v958
        %v982 = vsub.f32 %v903, %v958
        %v983 = vsub.f32 %v904, %v958
        %v984 = vsub.f32 %v905, %v958
        %v985 = vsub.f32 %v906, %v958
        %v986 = vsub.f32 %v907, %v958
        %v987 = vsub.f32 %v908, %v958
        %v988 = vadd.f32 %v979, 1e-05
        %v989 = vrsqrt.pop %v988
        %v990 = vmul.f32 %v980, %v989
        %v991 = vmul.f32 %v981, %v989
        %v992 = vmul.f32 %v982, %v989
        %v993 = vmul.f32 %v983, %v989
        %v994 = vmul.f32 %v984, %v989
        %v995 = vmul.f32 %v985, %v989
        %v996 = vmul.f32 %v986, %v989
        %v997 = vmul.f32 %v987, %v989
        %v998 = vld [vmem:[%s1 + $0x68] sm:$0xff]
        %v999 = vld [vmem:[%s1 + $0x70] sm:$0xff]
        %v1000 = vld [vmem:[%s1 + $0x78] sm:$0xff]
        %v1001 = vld [vmem:[%s1 + $0x80] sm:$0xff]
        %v1002 = vld [vmem:[%s1 + $0x88] sm:$0xff]
        %v1003 = vld [vmem:[%s1 + $0x90] sm:$0xff]
        %v1004 = vld [vmem:[%s1 + $0x98] sm:$0xff]
        %v1005 = vld [vmem:[%s1 + $0xa0] sm:$0xff]
        %v1006 = vld [vmem:[%s3 + $0x68] sm:$0xff]
        %v1007 = vld [vmem:[%s3 + $0x70] sm:$0xff]
        %v1008 = vld [vmem:[%s3 + $0x78] sm:$0xff]
        %v1009 = vld [vmem:[%s3 + $0x80] sm:$0xff]
        %v1010 = vld [vmem:[%s3 + $0x88] sm:$0xff]
        %v1011 = vld [vmem:[%s3 + $0x90] sm:$0xff]
        %v1012 = vld [vmem:[%s3 + $0x98] sm:$0xff]
        %v1013 = vld [vmem:[%s3 + $0xa0] sm:$0xff]
        %1015 = vset.pattern.permute.xlu0 0
        %1016 = vperm.xlu0 %1015, %v1006
        %v1017 = vpop.permute.xlu0 %1016
        %1020 = vset.pattern.permute.xlu0 0
        %1021 = vperm.xlu0 %1020, %v1007
        %v1022 = vpop.permute.xlu0 %1021
        %1025 = vset.pattern.permute.xlu0 0
        %1026 = vperm.xlu0 %1025, %v1008
        %v1027 = vpop.permute.xlu0 %1026
        %1030 = vset.pattern.permute.xlu0 0
        %1031 = vperm.xlu0 %1030, %v1009
        %v1032 = vpop.permute.xlu0 %1031
        %1035 = vset.pattern.permute.xlu0 0
        %1036 = vperm.xlu0 %1035, %v1010
        %v1037 = vpop.permute.xlu0 %1036
        %1040 = vset.pattern.permute.xlu0 0
        %1041 = vperm.xlu0 %1040, %v1011
        %v1042 = vpop.permute.xlu0 %1041
        %1045 = vset.pattern.permute.xlu0 0
        %1046 = vperm.xlu0 %1045, %v1012
        %v1047 = vpop.permute.xlu0 %1046
        %1050 = vset.pattern.permute.xlu0 0
        %1051 = vperm.xlu0 %1050, %v1013
        %v1052 = vpop.permute.xlu0 %1051
        %v1055 = vsel %vm374, %v998, 0
        %v1058 = vsel %vm374, %v999, 0
        %v1061 = vsel %vm374, %v1000, 0
        %v1064 = vsel %vm374, %v1001, 0
        %v1067 = vsel %vm374, %v1002, 0
        %v1070 = vsel %vm374, %v1003, 0
        %v1073 = vsel %vm374, %v1004, 0
        %v1076 = vsel %vm374, %v1005, 0
        %1078 = vmatprep.subr.mxu0 0.0
        %1079 = vmatpush1.msra.mxu0 0.0
        %1080 = vmatprep.subr.mxu0 0.0
        %1081 = vmatpush1.msra.mxu0 0.0
        %1082 = vmatprep.subr.mxu0 0.0
        %1083 = vmatpush1.msra.mxu0 0.0
        %1084 = vmatprep.subr.mxu0 0.0
        %1085 = vmatpush1.msra.mxu0 0.0
        %1086 = vmatprep.subr.mxu0 0.0
        %1087 = vmatpush1.msra.mxu0 0.0
        %1088 = vmatprep.subr.mxu0 0.0
        %1089 = vmatpush1.msra.mxu0 0.0
        %1090 = vmatprep.subr.mxu0 0.0
        %1091 = vmatpush1.msra.mxu0 0.0
        %1092 = vmatprep.subr.mxu0 0.0
        %1093 = vmatpush1.msra.mxu0 0.0
        %1094 = vmatprep.subr.mxu0 0.0
        %1095 = vmatpush1.msra.mxu0 0.0
        %1096 = vmatprep.subr.mxu0 0.0
        %1097 = vmatpush1.msra.mxu0 0.0
        %1098 = vmatprep.subr.mxu0 0.0
        %1099 = vmatpush1.msra.mxu0 0.0
        %1100 = vmatprep.subr.mxu0 0.0
        %1101 = vmatpush1.msra.mxu0 0.0
        %1102 = vmatprep.subr.mxu0 %v997
        %1103 = vmatpush1.msra.mxu0 %v996
        %1104 = vmatprep.subr.mxu0 %v995
        %1105 = vmatpush1.msra.mxu0 %v994
        %1106 = vmatprep.subr.mxu0 %v993
        %1107 = vmatpush1.msra.mxu0 %v992
        %1108 = vmatprep.subr.mxu0 %v991
        %1109 = vmatpush1.msra.mxu0 %v990
        %1110 = vmatprep.subr.mxu0 0.0
        %1111 = vmatpush2.msra.mxu0 0.0
        %1112 = vmatprep.subr.mxu0 0.0
        %1113 = vmatpush2.msra.mxu0 0.0
        %1114 = vmatprep.subr.mxu0 0.0
        %1115 = vmatpush2.msra.mxu0 0.0
        %1116 = vmatprep.subr.mxu0 0.0
        %1117 = vmatpush2.msra.mxu0 0.0
        %1118 = vmatprep.subr.mxu0 0.0
        %1119 = vmatpush2.msra.mxu0 0.0
        %1120 = vmatprep.subr.mxu0 0.0
        %1121 = vmatpush2.msra.mxu0 0.0
        %1122 = vmatprep.subr.mxu0 0.0
        %1123 = vmatpush2.msra.mxu0 0.0
        %1124 = vmatprep.subr.mxu0 0.0
        %1125 = vmatpush2.msra.mxu0 0.0
        %1126 = vmatprep.subr.mxu0 0.0
        %1127 = vmatpush2.msra.mxu0 0.0
        %1128 = vmatprep.subr.mxu0 0.0
        %1129 = vmatpush2.msra.mxu0 0.0
        %1130 = vmatprep.subr.mxu0 0.0
        %1131 = vmatpush2.msra.mxu0 0.0
        %1132 = vmatprep.subr.mxu0 0.0
        %1133 = vmatpush2.msra.mxu0 0.0
        %1134 = vmatprep.subr.mxu0 0.0
        %1135 = vmatpush2.msra.mxu0 0.0
        %1136 = vmatprep.subr.mxu0 0.0
        %1137 = vmatpush2.msra.mxu0 0.0
        %1138 = vmatprep.subr.mxu0 0.0
        %1139 = vmatpush2.msra.mxu0 0.0
        %1140 = vmatprep.subr.mxu0 0.0
        %1141 = vmatpush2.msra.mxu0 0.0
        %1142 = vmatprep.mubr.f32.mxu0 0.0
        %1143 = vmatmul.mubr.f32.gmra.mxu0 %v1055
        %v1144 = vpop.f32.mrf.mxu0
        %v1145 = vadd.f32 %v1017, %v1144
        %v1146 = vpop.f32.mrf.mxu0
        %v1147 = vadd.f32 %v1017, %v1146
        %1148 = vmatprep.mubr.f32.mxu0 0.0
        %1149 = vmatmul.mubr.f32.gmra.mxu0 %v1058
        %v1150 = vpop.f32.mrf.mxu0
        %v1151 = vadd.f32 %v1022, %v1150
        %v1152 = vpop.f32.mrf.mxu0
        %v1153 = vadd.f32 %v1022, %v1152
        %1154 = vmatprep.mubr.f32.mxu0 0.0
        %1155 = vmatmul.mubr.f32.gmra.mxu0 %v1061
        %v1156 = vpop.f32.mrf.mxu0
        %v1157 = vadd.f32 %v1027, %v1156
        %v1158 = vpop.f32.mrf.mxu0
        %v1159 = vadd.f32 %v1027, %v1158
        %1160 = vmatprep.mubr.f32.mxu0 0.0
        %1161 = vmatmul.mubr.f32.gmra.mxu0 %v1064
        %v1162 = vpop.f32.mrf.mxu0
        %v1163 = vadd.f32 %v1032, %v1162
        %v1164 = vpop.f32.mrf.mxu0
        %v1165 = vadd.f32 %v1032, %v1164
        %1166 = vmatprep.mubr.f32.mxu0 0.0
        %1167 = vmatmul.mubr.f32.gmra.mxu0 %v1067
        %v1168 = vpop.f32.mrf.mxu0
        %v1169 = vadd.f32 %v1037, %v1168
        %v1170 = vpop.f32.mrf.mxu0
        %v1171 = vadd.f32 %v1037, %v1170
        %1172 = vmatprep.mubr.f32.mxu0 0.0
        %1173 = vmatmul.mubr.f32.gmra.mxu0 %v1070
        %v1174 = vpop.f32.mrf.mxu0
        %v1175 = vadd.f32 %v1042, %v1174
        %v1176 = vpop.f32.mrf.mxu0
        %v1177 = vadd.f32 %v1042, %v1176
        %1178 = vmatprep.mubr.f32.mxu0 0.0
        %1179 = vmatmul.mubr.f32.gmra.mxu0 %v1073
        %v1180 = vpop.f32.mrf.mxu0
        %v1181 = vadd.f32 %v1047, %v1180
        %v1182 = vpop.f32.mrf.mxu0
        %v1183 = vadd.f32 %v1047, %v1182
        %1184 = vmatprep.mubr.f32.mxu0 0.0
        %1185 = vmatmul.mubr.f32.gmra.mxu0 %v1076
        %v1186 = vpop.f32.mrf.mxu0
        %v1187 = vadd.f32 %v1052, %v1186
        %v1188 = vpop.f32.mrf.mxu0
        %v1189 = vadd.f32 %v1052, %v1188
        %1190 = vdwg.mxu0
        %v1191 = vxor.u32 %v1145, 2147483648
        %v1192 = vxor.u32 %v1147, 2147483648
        %v1193 = vxor.u32 %v1151, 2147483648
        %v1194 = vxor.u32 %v1153, 2147483648
        %v1195 = vxor.u32 %v1157, 2147483648
        %v1196 = vxor.u32 %v1159, 2147483648
        %v1197 = vxor.u32 %v1163, 2147483648
        %v1198 = vxor.u32 %v1165, 2147483648
        %v1199 = vxor.u32 %v1169, 2147483648
        %v1200 = vxor.u32 %v1171, 2147483648
        %v1201 = vxor.u32 %v1175, 2147483648
        %v1202 = vxor.u32 %v1177, 2147483648
        %v1203 = vxor.u32 %v1181, 2147483648
        %v1204 = vxor.u32 %v1183, 2147483648
        %v1205 = vxor.u32 %v1187, 2147483648
        %v1206 = vxor.u32 %v1189, 2147483648
        %v1207 = vmul.f32 %v1191, 1.442695
        %v1208 = vpow.pop %v1207
        %v1209 = vmul.f32 %v1192, 1.442695
        %v1210 = vpow.pop %v1209
        %v1211 = vmul.f32 %v1193, 1.442695
        %v1212 = vpow.pop %v1211
        %v1213 = vmul.f32 %v1194, 1.442695
        %v1214 = vpow.pop %v1213
        %v1215 = vmul.f32 %v1195, 1.442695
        %v1216 = vpow.pop %v1215
        %v1217 = vmul.f32 %v1196, 1.442695
        %v1218 = vpow.pop %v1217
        %v1219 = vmul.f32 %v1197, 1.442695
        %v1220 = vpow.pop %v1219
        %v1221 = vmul.f32 %v1198, 1.442695
        %v1222 = vpow.pop %v1221
        %v1223 = vmul.f32 %v1199, 1.442695
        %v1224 = vpow.pop %v1223
        %v1225 = vmul.f32 %v1200, 1.442695
        %v1226 = vpow.pop %v1225
        %v1227 = vmul.f32 %v1201, 1.442695
        %v1228 = vpow.pop %v1227
        %v1229 = vmul.f32 %v1202, 1.442695
        %v1230 = vpow.pop %v1229
        %v1231 = vmul.f32 %v1203, 1.442695
        %v1232 = vpow.pop %v1231
        %v1233 = vmul.f32 %v1204, 1.442695
        %v1234 = vpow.pop %v1233
        %v1235 = vmul.f32 %v1205, 1.442695
        %v1236 = vpow.pop %v1235
        %v1237 = vmul.f32 %v1206, 1.442695
        %v1238 = vpow.pop %v1237
        %v1239 = vadd.f32 %v1208, 1.0
        %v1240 = vadd.f32 %v1210, 1.0
        %v1241 = vadd.f32 %v1212, 1.0
        %v1242 = vadd.f32 %v1214, 1.0
        %v1243 = vadd.f32 %v1216, 1.0
        %v1244 = vadd.f32 %v1218, 1.0
        %v1245 = vadd.f32 %v1220, 1.0
        %v1246 = vadd.f32 %v1222, 1.0
        %v1247 = vadd.f32 %v1224, 1.0
        %v1248 = vadd.f32 %v1226, 1.0
        %v1249 = vadd.f32 %v1228, 1.0
        %v1250 = vadd.f32 %v1230, 1.0
        %v1251 = vadd.f32 %v1232, 1.0
        %v1252 = vadd.f32 %v1234, 1.0
        %v1253 = vadd.f32 %v1236, 1.0
        %v1254 = vadd.f32 %v1238, 1.0
        %v1255 = vrcp.pop %v1239
        %v1256 = vmul.f32 1.0, %v1255
        %v1257 = vrcp.pop %v1240
        %v1258 = vmul.f32 1.0, %v1257
        %v1259 = vrcp.pop %v1241
        %v1260 = vmul.f32 1.0, %v1259
        %v1261 = vrcp.pop %v1242
        %v1262 = vmul.f32 1.0, %v1261
        %v1263 = vrcp.pop %v1243
        %v1264 = vmul.f32 1.0, %v1263
        %v1265 = vrcp.pop %v1244
        %v1266 = vmul.f32 1.0, %v1265
        %v1267 = vrcp.pop %v1245
        %v1268 = vmul.f32 1.0, %v1267
        %v1269 = vrcp.pop %v1246
        %v1270 = vmul.f32 1.0, %v1269
        %v1271 = vrcp.pop %v1247
        %v1272 = vmul.f32 1.0, %v1271
        %v1273 = vrcp.pop %v1248
        %v1274 = vmul.f32 1.0, %v1273
        %v1275 = vrcp.pop %v1249
        %v1276 = vmul.f32 1.0, %v1275
        %v1277 = vrcp.pop %v1250
        %v1278 = vmul.f32 1.0, %v1277
        %v1279 = vrcp.pop %v1251
        %v1280 = vmul.f32 1.0, %v1279
        %v1281 = vrcp.pop %v1252
        %v1282 = vmul.f32 1.0, %v1281
        %v1283 = vrcp.pop %v1253
        %v1284 = vmul.f32 1.0, %v1283
        %v1285 = vrcp.pop %v1254
        %v1286 = vmul.f32 1.0, %v1285
        %v1287 = vmul.f32 %v1145, %v1256
        %v1288 = vmul.f32 %v1147, %v1258
        %v1289 = vmul.f32 %v1151, %v1260
        %v1290 = vmul.f32 %v1153, %v1262
        %v1291 = vmul.f32 %v1157, %v1264
        %v1292 = vmul.f32 %v1159, %v1266
        %v1293 = vmul.f32 %v1163, %v1268
        %v1294 = vmul.f32 %v1165, %v1270
        %v1295 = vmul.f32 %v1169, %v1272
        %v1296 = vmul.f32 %v1171, %v1274
        %v1297 = vmul.f32 %v1175, %v1276
        %v1298 = vmul.f32 %v1177, %v1278
        %v1299 = vmul.f32 %v1181, %v1280
        %v1300 = vmul.f32 %v1183, %v1282
        %v1301 = vmul.f32 %v1187, %v1284
        %v1302 = vmul.f32 %v1189, %v1286
        %v1303 = vld [vmem:[%s2] sm:$0xff]
        %v1304 = vld [vmem:[%s2 + $0x8] sm:$0xff]
        %v1305 = vld [vmem:[%s2 + $0x10] sm:$0xff]
        %v1306 = vld [vmem:[%s2 + $0x18] sm:$0xff]
        %v1307 = vld [vmem:[%s3 + $0xa8] sm:$0xff]
        %v1308 = vld [vmem:[%s3 + $0xb0] sm:$0xff]
        %v1309 = vld [vmem:[%s3 + $0xb8] sm:$0xff]
        %v1310 = vld [vmem:[%s3 + $0xc0] sm:$0xff]
        %1312 = vset.pattern.permute.xlu0 0
        %1313 = vperm.xlu0 %1312, %v1307
        %v1314 = vpop.permute.xlu0 %1313
        %1317 = vset.pattern.permute.xlu0 0
        %1318 = vperm.xlu0 %1317, %v1308
        %v1319 = vpop.permute.xlu0 %1318
        %1322 = vset.pattern.permute.xlu0 0
        %1323 = vperm.xlu0 %1322, %v1309
        %v1324 = vpop.permute.xlu0 %1323
        %1327 = vset.pattern.permute.xlu0 0
        %1328 = vperm.xlu0 %1327, %v1310
        %v1329 = vpop.permute.xlu0 %1328
        %vm1331 = vcmask 523264
        %v1333 = vsel %vm1331, %v1303, 0
        %v1336 = vsel %vm1331, %v1304, 0
        %v1339 = vsel %vm1331, %v1305, 0
        %v1342 = vsel %vm1331, %v1306, 0
        %1344 = vmatprep.subr.mxu0 0.0
        %1345 = vmatpush1.msra.mxu0 0.0
        %1346 = vmatprep.subr.mxu0 0.0
        %1347 = vmatpush1.msra.mxu0 0.0
        %1348 = vmatprep.subr.mxu0 0.0
        %1349 = vmatpush1.msra.mxu0 0.0
        %1350 = vmatprep.subr.mxu0 0.0
        %1351 = vmatpush1.msra.mxu0 0.0
        %1352 = vmatprep.subr.mxu0 0.0
        %1353 = vmatpush1.msra.mxu0 0.0
        %1354 = vmatprep.subr.mxu0 0.0
        %1355 = vmatpush1.msra.mxu0 0.0
        %1356 = vmatprep.subr.mxu0 0.0
        %1357 = vmatpush1.msra.mxu0 0.0
        %1358 = vmatprep.subr.mxu0 0.0
        %1359 = vmatpush1.msra.mxu0 0.0
        %1360 = vmatprep.subr.mxu0 %v1302
        %1361 = vmatpush1.msra.mxu0 %v1301
        %1362 = vmatprep.subr.mxu0 %v1300
        %1363 = vmatpush1.msra.mxu0 %v1299
        %1364 = vmatprep.subr.mxu0 %v1298
        %1365 = vmatpush1.msra.mxu0 %v1297
        %1366 = vmatprep.subr.mxu0 %v1296
        %1367 = vmatpush1.msra.mxu0 %v1295
        %1368 = vmatprep.subr.mxu0 %v1294
        %1369 = vmatpush1.msra.mxu0 %v1293
        %1370 = vmatprep.subr.mxu0 %v1292
        %1371 = vmatpush1.msra.mxu0 %v1291
        %1372 = vmatprep.subr.mxu0 %v1290
        %1373 = vmatpush1.msra.mxu0 %v1289
        %1374 = vmatprep.subr.mxu0 %v1288
        %1375 = vmatpush1.msra.mxu0 %v1287
        %1376 = vmatprep.subr.mxu0 0.0
        %1377 = vmatpush2.msra.mxu0 0.0
        %1378 = vmatprep.subr.mxu0 0.0
        %1379 = vmatpush2.msra.mxu0 0.0
        %1380 = vmatprep.subr.mxu0 0.0
        %1381 = vmatpush2.msra.mxu0 0.0
        %1382 = vmatprep.subr.mxu0 0.0
        %1383 = vmatpush2.msra.mxu0 0.0
        %1384 = vmatprep.subr.mxu0 0.0
        %1385 = vmatpush2.msra.mxu0 0.0
        %1386 = vmatprep.subr.mxu0 0.0
        %1387 = vmatpush2.msra.mxu0 0.0
        %1388 = vmatprep.subr.mxu0 0.0
        %1389 = vmatpush2.msra.mxu0 0.0
        %1390 = vmatprep.subr.mxu0 0.0
        %1391 = vmatpush2.msra.mxu0 0.0
        %1392 = vmatprep.subr.mxu0 0.0
        %1393 = vmatpush2.msra.mxu0 0.0
        %1394 = vmatprep.subr.mxu0 0.0
        %1395 = vmatpush2.msra.mxu0 0.0
        %1396 = vmatprep.subr.mxu0 0.0
        %1397 = vmatpush2.msra.mxu0 0.0
        %1398 = vmatprep.subr.mxu0 0.0
        %1399 = vmatpush2.msra.mxu0 0.0
        %1400 = vmatprep.subr.mxu0 0.0
        %1401 = vmatpush2.msra.mxu0 0.0
        %1402 = vmatprep.subr.mxu0 0.0
        %1403 = vmatpush2.msra.mxu0 0.0
        %1404 = vmatprep.subr.mxu0 0.0
        %1405 = vmatpush2.msra.mxu0 0.0
        %1406 = vmatprep.subr.mxu0 0.0
        %1407 = vmatpush2.msra.mxu0 0.0
        %1408 = vmatprep.mubr.f32.mxu0 0.0
        %1409 = vmatmul.mubr.f32.gmra.mxu0 %v1333
        %v1410 = vpop.f32.mrf.mxu0
        %v1411 = vadd.f32 %v1314, %v1410
        %v1412 = vpop.f32.mrf.mxu0
        %v1413 = vadd.f32 %v1314, %v1412
        %1414 = vmatprep.mubr.f32.mxu0 0.0
        %1415 = vmatmul.mubr.f32.gmra.mxu0 %v1336
        %v1416 = vpop.f32.mrf.mxu0
        %v1417 = vadd.f32 %v1319, %v1416
        %v1418 = vpop.f32.mrf.mxu0
        %v1419 = vadd.f32 %v1319, %v1418
        %1420 = vmatprep.mubr.f32.mxu0 0.0
        %1421 = vmatmul.mubr.f32.gmra.mxu0 %v1339
        %v1422 = vpop.f32.mrf.mxu0
        %v1423 = vadd.f32 %v1324, %v1422
        %v1424 = vpop.f32.mrf.mxu0
        %v1425 = vadd.f32 %v1324, %v1424
        %1426 = vmatprep.mubr.f32.mxu0 0.0
        %1427 = vmatmul.mubr.f32.gmra.mxu0 %v1342
        %v1428 = vpop.f32.mrf.mxu0
        %v1429 = vadd.f32 %v1329, %v1428
        %v1430 = vpop.f32.mrf.mxu0
        %v1431 = vadd.f32 %v1329, %v1430
        %1432 = vdwg.mxu0
        %v1433 = vadd.f32 %v901, %v1411
        %v1434 = vadd.f32 %v902, %v1413
        %v1435 = vadd.f32 %v903, %v1417
        %v1436 = vadd.f32 %v904, %v1419
        %v1437 = vadd.f32 %v905, %v1423
        %v1438 = vadd.f32 %v906, %v1425
        %v1439 = vadd.f32 %v907, %v1429
        %v1440 = vadd.f32 %v908, %v1431
        %1441 = vst [vmem:[%s190] sm:$0xff] %v1433
        %1442 = vst [vmem:[%s190 + $0x8] sm:$0xff] %v1434
        %1443 = vst [vmem:[%s190 + $0x10] sm:$0xff] %v1435
        %1444 = vst [vmem:[%s190 + $0x18] sm:$0xff] %v1436
        %1445 = vst [vmem:[%s190 + $0x20] sm:$0xff] %v1437
        %1446 = vst [vmem:[%s190 + $0x28] sm:$0xff] %v1438
        %1447 = vst [vmem:[%s190 + $0x30] sm:$0xff] %v1439
        %1448 = vst [vmem:[%s190 + $0x38] sm:$0xff] %v1440
        %s1449 = sand.u32 %s115, 1
        %s1450 = scalar_lea.sflag [#allocation3], %s1449
        %s1451 = sand.u32 %s115, 1
        %s1452 = smul.addr %s1451, 64
        %s1453 = scalar_lea.vmem [#allocation2], %s1452
        // Predicated region
        $region37: #{tpu_custom_call.1} parent=35 // pred_check
          %p1454 = pneg %p125
        $region38: #{tpu_custom_call.1} parent=35 // pred_check_branch
          %1456 = sbr.rel (%p1454) target = $region40
        $region39: #{tpu_custom_call.1} parent=35 // pred_region
          %s1458 = ssub.s32 1024, 1024
          %1459 = vsyncadd %s1450, %s1458
          %s1460 = smul.addr %s18, 8
          %s1461 = smul.addr %s1460, 128
          %s1462 = scalar_lea.hbm %s4, %s1461
          %s1463 = sshll.u32 %s1453, 4
          %s1464 = int_to_ptr.vmem [resolvable:$true] %s1463
          %1469 = dma.vmem_to_hbm [thread:$0]  %s1464, 1024, %s1462, %s1450, 256, 256, 16
        $region40: #{tpu_custom_call.1} parent=35 // pred_fallthru
          _
      $region36: #{tpu_custom_call.1} parent=5 // pred_fallthru
        _
      %p1470 = scmp.le.s32.totalorder 2, %s13
      // Predicated region
      $region41: #{tpu_custom_call.1} parent=5 // pred_check
        %p1471 = pneg %p1470
      $region42: #{tpu_custom_call.1} parent=5 // pred_check_branch
        %1473 = sbr.rel (%p1471) target = $region44
      $region43: #{tpu_custom_call.1} parent=5 // pred_region
        %s1474 = ssub.s32 %s13, 2
        // Predicated region
        $region45: #{tpu_custom_call.1} parent=43 // pred_check
          %p1475 = pneg %p131
        $region46: #{tpu_custom_call.1} parent=43 // pred_check_branch
          %1477 = sbr.rel (%p1475) target = $region48
        $region47: #{tpu_custom_call.1} parent=43 // pred_region
          %s1478 = sand.u32 %s116, 1
          %s1479 = scalar_lea.sflag [#allocation3], %s1478
          %s1480 = sand.u32 %s116, 1
          %s1481 = smul.addr %s1480, 64
          %s1482 = scalar_lea.vmem [#allocation2], %s1481
          %1483 = dma.done %s1479, 1024
        $region48: #{tpu_custom_call.1} parent=43 // pred_fallthru
          _
      $region44: #{tpu_custom_call.1} parent=5 // pred_fallthru
        _
    $region6: #{tpu_custom_call.1} parent=1 // loop_footer
      %s17 = sadd.s32 1, %s13
    $region7: #{tpu_custom_call.1} parent=1 // loop_footer_branch
      %12 = sbr.rel target = $region3
    $region8: #{tpu_custom_call.1} parent=1 // loop_exit
      _
    %1484 = vsyncpa [#allocation3], 1
    %s1485 = scalar_lea.sflag [#allocation3], 1
    %1486 = vsyncpa %s1485, 1

</llo_original>
